<compile_context>
chip_gen: v6e
topology: v6e:2x2x1
jax: 0.10.0
libtpu: 0.0.40
codegen_flags: <defaults>
</compile_context>

<pallas_src>
import math
from functools import partial

import jax
import jax.numpy as jnp
from jax.experimental import pallas as pl
from jax.experimental.pallas import tpu as pltpu


# ----------------------------------------------------------------------------------
# LayerNorm matching the reference LayerNormalization:
#   std is torch.std (ddof=1), denominator is (std + eps)  (NOT sqrt(var + eps)).
# ----------------------------------------------------------------------------------
def _layernorm_in_kernel(v, alpha, bias, *, eps=1e-6, approx=False):
    n = v.shape[-1]
    mean = jnp.mean(v, axis=-1, keepdims=True)
    centered = v - mean
    var = jnp.sum(centered * centered, axis=-1, keepdims=True) * (1.0 / (n - 1))
    inv = pl.reciprocal(jnp.sqrt(var) + eps, approx=approx)
    return alpha * centered * inv + bias


def _layernorm_ref(v, alpha, bias, eps=1e-6):
    n = v.shape[-1]
    mean = jnp.mean(v, axis=-1, keepdims=True)
    var = jnp.sum((v - mean) ** 2, axis=-1, keepdims=True) / (n - 1)
    std = jnp.sqrt(var)
    return alpha * (v - mean) / (std + eps) + bias


# ----------------------------------------------------------------------------------
# Kernel
# ----------------------------------------------------------------------------------
def encoder_block_kernel(
    x_ref, maskb_ref,
    wqkv_ref, bqkv_ref,          # (E, 3E) fused QKV weight, (1, 3E) bias
    wo_ref, bo_ref,              # (H, d_k, E) per-head output projection, (1, E) bias
    ln1_a_ref, ln1_b_ref,
    w1_ref, b1_ref, w2_ref, b2_ref,
    ln2_a_ref, ln2_b_ref,
    out_ref,
    *, num_heads, compute_dtype, approx_recip,
):
    f32 = jnp.float32
    x = x_ref[...]                       # (Bt, S, E)   f32
    mb = maskb_ref[...]                  # (Bt, S, S)   additive mask bias (0 / -1e9)

    Bt, S, E = x.shape
    H = num_heads
    d_k = E // H
    R = Bt * S
    scale = 1.0 / math.sqrt(d_k)

    def cast(t):                         # MXU operand dtype (bf16 fast / f32 strict)
        return t.astype(compute_dtype)

    # ------------- residual connection 0: self-attention on norm(x) ---------------
    xn = _layernorm_in_kernel(x, ln1_a_ref[...], ln1_b_ref[...], approx=approx_recip)

    # Fused QKV projection: one MXU matmul with 3x wider N, f32 accumulation.
    qkv = jnp.dot(cast(xn.reshape(R, E)), wqkv_ref[...],
                  preferred_element_type=f32) + bqkv_ref[...]         # (R, 3E) f32
    qkv = qkv.reshape(Bt, S, 3 * E)

    # Per-head attention.  The output projection is accumulated per head, so the
    # head-concat lane shuffle disappears; mask bias is added (precomputed outside).
    acc = jnp.zeros((R, E), dtype=f32)
    for h in range(H):
        lo = h * d_k
        qh = cast(qkv[:, :, 0 * E + lo: 0 * E + lo + d_k])            # (Bt, S, d_k)
        kh = cast(qkv[:, :, 1 * E + lo: 1 * E + lo + d_k])
        vh = cast(qkv[:, :, 2 * E + lo: 2 * E + lo + d_k])

        s = jnp.einsum("bqd,bkd->bqk", qh, kh,
                       preferred_element_type=f32) * scale            # (Bt, S, S)
        s = s + mb                                                    # additive mask

        # explicit softmax; reciprocal goes to the EUP slot when approx=True
        m = jnp.max(s, axis=-1, keepdims=True)
        p = jnp.exp(s - m)
        l = jnp.sum(p, axis=-1, keepdims=True)
        p = p * pl.reciprocal(l, approx=approx_recip)

        ctx = jnp.einsum("bqk,bkd->bqd", cast(p), vh,
                         preferred_element_type=f32)                  # (Bt, S, d_k)

        # accumulate this head's slice of the output projection: ctx_h @ wo[h]
        acc = acc + jnp.dot(cast(ctx.reshape(R, d_k)), wo_ref[h],
                            preferred_element_type=f32)               # (R, E)

    attn = acc + bo_ref[...]
    x1 = x + attn.reshape(Bt, S, E)      # dropout p=0 -> identity

    # ------------- residual connection 1: feed-forward on norm(x1) ----------------
    x1n = _layernorm_in_kernel(x1, ln2_a_ref[...], ln2_b_ref[...], approx=approx_recip)
    hdd = jnp.dot(cast(x1n.reshape(R, E)), w1_ref[...],
                  preferred_element_type=f32) + b1_ref[...]           # (R, d_ff)
    hdd = jnp.maximum(hdd, 0.0)                                       # ReLU
    ff = jnp.dot(cast(hdd), w2_ref[...],
                 preferred_element_type=f32) + b2_ref[...]            # (R, E)

    out_ref[...] = (x1 + ff.reshape(Bt, S, E)).astype(out_ref.dtype)


# ----------------------------------------------------------------------------------
# Wrapper
# ----------------------------------------------------------------------------------
def _pick_block_b(B, S, target_rows=1024):
    """Fold as many batches as possible into one block (amortizes per-step overhead)."""
    bb = 1
    for c in range(1, B + 1):
        if B % c == 0 and c * S <= target_rows:
            bb = c
    return bb


def encoder_block(x, mask, params, *, num_heads, compute_dtype=jnp.bfloat16,
                  block_b=None):
    f32 = jnp.float32
    B, S, E = x.shape
    d_ff = params["w1"].shape[1]
    assert E % num_heads == 0
    d_k = E // num_heads

    if block_b is None:
        block_b = _pick_block_b(B, S)
    assert B % block_b == 0
    grid = (B // block_b,)

    approx_recip = compute_dtype != jnp.float32

    # Fuse Q/K/V weights/biases into a single (E, 3E) / (1, 3E) operand.
    wqkv = jnp.concatenate([params["wq"], params["wk"], params["wv"]], axis=1)
    bqkv = jnp.concatenate([params["bq"], params["bk"], params["bv"]], axis=1)
    # Per-head output projection layout (H, d_k, E): leading-dim indexing in-kernel.
    wo_heads = params["wo"].reshape(num_heads, d_k, E)

    # Precompute the additive attention-mask bias once (hoists compare+select out of
    # the kernel entirely).
    mask_bias = jnp.where(mask == 0.0, jnp.float32(-1.0e9), jnp.float32(0.0))

    def w(t):   # large matmul weights in the compute dtype (bf16 halves DMA/VMEM)
        return t.astype(compute_dtype)

    def rep(shape):
        # grid-invariant (weight) block: full array, same block for every grid step
        return pl.BlockSpec(shape, lambda b: (0,) * len(shape))

    in_specs = [
        pl.BlockSpec((block_b, S, E), lambda b: (b, 0, 0)),   # x
        pl.BlockSpec((block_b, S, S), lambda b: (b, 0, 0)),   # mask bias
        rep((E, 3 * E)), rep((1, 3 * E)),                     # wqkv, bqkv
        rep((num_heads, d_k, E)), rep((1, E)),                # wo (per-head), bo
        rep((1, E)), rep((1, E)),                             # ln1 alpha, bias
        rep((E, d_ff)), rep((1, d_ff)),                       # w1, b1
        rep((d_ff, E)), rep((1, E)),                          # w2, b2
        rep((1, E)), rep((1, E)),                             # ln2 alpha, bias
    ]

    kernel = partial(
        encoder_block_kernel,
        num_heads=num_heads,
        compute_dtype=compute_dtype,
        approx_recip=approx_recip,
    )

    return pl.pallas_call(
        kernel,
        out_shape=jax.ShapeDtypeStruct((B, S, E), f32),
        grid=grid,
        in_specs=in_specs,
        out_specs=pl.BlockSpec((block_b, S, E), lambda b: (b, 0, 0)),
        compiler_params=pltpu.CompilerParams(
            dimension_semantics=("parallel",),
            vmem_limit_bytes=48 * 1024 * 1024,   # explicit budget (fits v7x's 64 MiB)
        ),
    )(
        x.astype(f32), mask_bias,
        w(wqkv), bqkv.astype(f32),
        w(wo_heads), params["bo"].astype(f32),
        params["ln1_a"].astype(f32), params["ln1_b"].astype(f32),
        w(params["w1"]), params["b1"].astype(f32),
        w(params["w2"]), params["b2"].astype(f32),
        params["ln2_a"].astype(f32), params["ln2_b"].astype(f32),
    )


# ----------------------------------------------------------------------------------
# Pure-JAX reference mirroring the PyTorch forward (fp32), for validation.
# ----------------------------------------------------------------------------------
def encoder_block_reference(x, mask, params, *, num_heads):
    B, S, E = x.shape
    d_k = E // num_heads

    xn = _layernorm_ref(x, params["ln1_a"], params["ln1_b"])
    q = xn @ params["wq"] + params["bq"]
    k = xn @ params["wk"] + params["bk"]
    v = xn @ params["wv"] + params["bv"]

    def split(t):  # (B,S,E) -> (B,H,S,dk)
        return t.reshape(B, S, num_heads, d_k).transpose(0, 2, 1, 3)

    qh, kh, vh = split(q), split(k), split(v)
    scores = jnp.einsum("bhsd,bhtd->bhst", qh, kh) / math.sqrt(d_k)
    scores = jnp.where(mask[:, None, :, :] == 0.0, -1.0e9, scores)
    scores = jax.nn.softmax(scores, axis=-1)
    attn = jnp.einsum("bhst,bhtd->bhsd", scores, vh)
    attn = attn.transpose(0, 2, 1, 3).reshape(B, S, E)
    attn = attn @ params["wo"] + params["bo"]
    x1 = x + attn

    x1n = _layernorm_ref(x1, params["ln2_a"], params["ln2_b"])
    h = jnp.maximum(x1n @ params["w1"] + params["b1"], 0.0)
    ff = h @ params["w2"] + params["b2"]
    return x1 + ff


if __name__ == "__main__":
    B, S, E, H, D_FF = 2, 8, 32, 4, 64

    keys = jax.random.split(jax.random.PRNGKey(0), 14)

    def init(k, shape, scale=0.1):
        return (scale * jax.random.normal(k, shape)).astype(jnp.float32)

    params = {
        # linear weights stored as (in, out) (torch weight (out,in) transposed)
        "wq": init(keys[0], (E, E)), "bq": init(keys[1], (1, E)),
        "wk": init(keys[2], (E, E)), "bk": init(keys[3], (1, E)),
        "wv": init(keys[4], (E, E)), "bv": init(keys[5], (1, E)),
        "wo": init(keys[6], (E, E)), "bo": init(keys[7], (1, E)),
        "ln1_a": jnp.ones((1, E), jnp.float32), "ln1_b": jnp.zeros((1, E), jnp.float32),
        "w1": init(keys[8], (E, D_FF)), "b1": init(keys[9], (1, D_FF)),
        "w2": init(keys[10], (D_FF, E)), "b2": init(keys[11], (1, E)),
        "ln2_a": jnp.ones((1, E), jnp.float32), "ln2_b": jnp.zeros((1, E), jnp.float32),
    }

    x = jax.random.normal(keys[12], (B, S, E), dtype=jnp.float32)
    # mask: 1.0 = attend, 0.0 = masked (pad the last two key positions of batch 1)
    mask = jnp.ones((B, S, S), dtype=jnp.float32)
    mask = mask.at[1, :, S - 2:].set(0.0)

    ref = encoder_block_reference(x, mask, params, num_heads=H)

    # Fast path: bf16 MXU operands, f32 accumulation.  Tolerance reflects expected
    # bf16 quantization delta only (semantics unchanged).
    out_fast = jax.block_until_ready(encoder_block(x, mask, params, num_heads=H))
    assert out_fast.shape == (B, S, E)
    err_fast = float(jnp.max(jnp.abs(out_fast - ref)))
    assert jnp.allclose(out_fast, ref, atol=3e-2, rtol=3e-2), err_fast

    # Strict f32 path: validates exact module semantics to tight tolerance.
    out_f32 = jax.block_until_ready(
        encoder_block(x, mask, params, num_heads=H, compute_dtype=jnp.float32))
    err_f32 = float(jnp.max(jnp.abs(out_f32 - ref)))
    assert jnp.allclose(out_f32, ref, atol=1e-3, rtol=1e-3), err_f32

    print("KERNEL_OK")
</pallas_src>

<mosaic_0001>
module attributes {stable_mosaic.version = 11 : i64} {
  func.func @encoder_block_kernel(%arg0: i32, %arg1: memref<2x8x32xf32, #tpu.memory_space<vmem>>, %arg2: memref<2x8x8xf32, #tpu.memory_space<vmem>>, %arg3: memref<32x96xbf16, #tpu.memory_space<vmem>>, %arg4: memref<1x96xf32, #tpu.memory_space<vmem>>, %arg5: memref<4x8x32xbf16, #tpu.memory_space<vmem>>, %arg6: memref<1x32xf32, #tpu.memory_space<vmem>>, %arg7: memref<1x32xf32, #tpu.memory_space<vmem>>, %arg8: memref<1x32xf32, #tpu.memory_space<vmem>>, %arg9: memref<32x64xbf16, #tpu.memory_space<vmem>>, %arg10: memref<1x64xf32, #tpu.memory_space<vmem>>, %arg11: memref<64x32xbf16, #tpu.memory_space<vmem>>, %arg12: memref<1x32xf32, #tpu.memory_space<vmem>>, %arg13: memref<1x32xf32, #tpu.memory_space<vmem>>, %arg14: memref<1x32xf32, #tpu.memory_space<vmem>>, %arg15: memref<2x8x32xf32, #tpu.memory_space<vmem>>) attributes {dimension_semantics = [#tpu.dimension_semantics<parallel>], iteration_bounds = array<i64: 1>, scalar_prefetch = 0 : i64, scratch_operands = 0 : i64, tpu.core_type = #tpu.core_type<tc>, window_params = [{transform_indices = @transform_0, window_bounds = array<i64: 2, 8, 32>}, {transform_indices = @transform_1, window_bounds = array<i64: 2, 8, 8>}, {pipeline_mode = #tpu.pipeline_mode<synchronous>, transform_indices = @transform_2, window_bounds = array<i64: 32, 96>}, {pipeline_mode = #tpu.pipeline_mode<synchronous>, transform_indices = @transform_3, window_bounds = array<i64: 1, 96>}, {pipeline_mode = #tpu.pipeline_mode<synchronous>, transform_indices = @transform_4, window_bounds = array<i64: 4, 8, 32>}, {pipeline_mode = #tpu.pipeline_mode<synchronous>, transform_indices = @transform_5, window_bounds = array<i64: 1, 32>}, {pipeline_mode = #tpu.pipeline_mode<synchronous>, transform_indices = @transform_6, window_bounds = array<i64: 1, 32>}, {pipeline_mode = #tpu.pipeline_mode<synchronous>, transform_indices = @transform_7, window_bounds = array<i64: 1, 32>}, {pipeline_mode = #tpu.pipeline_mode<synchronous>, transform_indices = @transform_8, window_bounds = array<i64: 32, 64>}, {pipeline_mode = #tpu.pipeline_mode<synchronous>, transform_indices = @transform_9, window_bounds = array<i64: 1, 64>}, {pipeline_mode = #tpu.pipeline_mode<synchronous>, transform_indices = @transform_10, window_bounds = array<i64: 64, 32>}, {pipeline_mode = #tpu.pipeline_mode<synchronous>, transform_indices = @transform_11, window_bounds = array<i64: 1, 32>}, {pipeline_mode = #tpu.pipeline_mode<synchronous>, transform_indices = @transform_12, window_bounds = array<i64: 1, 32>}, {pipeline_mode = #tpu.pipeline_mode<synchronous>, transform_indices = @transform_13, window_bounds = array<i64: 1, 32>}, {transform_indices = @transform_14, window_bounds = array<i64: 2, 8, 32>}]} {
    %c0 = arith.constant 0 : index
    %c0_0 = arith.constant 0 : index
    %c0_1 = arith.constant 0 : index
    %0 = vector.load %arg1[%c0, %c0_0, %c0_1] : memref<2x8x32xf32, #tpu.memory_space<vmem>>, vector<2x8x32xf32>
    %c0_2 = arith.constant 0 : index
    %c0_3 = arith.constant 0 : index
    %c0_4 = arith.constant 0 : index
    %1 = vector.load %arg2[%c0_2, %c0_3, %c0_4] : memref<2x8x8xf32, #tpu.memory_space<vmem>>, vector<2x8x8xf32>
    %c0_5 = arith.constant 0 : index
    %c0_6 = arith.constant 0 : index
    %2 = vector.load %arg7[%c0_5, %c0_6] : memref<1x32xf32, #tpu.memory_space<vmem>>, vector<1x32xf32>
    %c0_7 = arith.constant 0 : index
    %c0_8 = arith.constant 0 : index
    %3 = vector.load %arg8[%c0_7, %c0_8] : memref<1x32xf32, #tpu.memory_space<vmem>>, vector<1x32xf32>
    %cst = arith.constant dense<0.000000e+00> : vector<2x8xf32>
    %4 = vector.multi_reduction <add>, %0, %cst [2] : vector<2x8x32xf32> to vector<2x8xf32>
    %5 = vector.shape_cast %4 : vector<2x8xf32> to vector<2x8x1xf32>
    %cst_9 = arith.constant 3.200000e+01 : f32
    %6 = vector.broadcast %cst_9 : f32 to vector<2x8x1xf32>
    %7 = arith.divf %5, %6 : vector<2x8x1xf32>
    %8 = vector.broadcast %7 : vector<2x8x1xf32> to vector<2x8x32xf32>
    %9 = arith.subf %0, %8 : vector<2x8x32xf32>
    %10 = arith.mulf %9, %9 : vector<2x8x32xf32>
    %cst_10 = arith.constant dense<0.000000e+00> : vector<2x8xf32>
    %11 = vector.multi_reduction <add>, %10, %cst_10 [2] : vector<2x8x32xf32> to vector<2x8xf32>
    %12 = vector.shape_cast %11 : vector<2x8xf32> to vector<2x8x1xf32>
    %cst_11 = arith.constant 0.0322580636 : f32
    %13 = vector.broadcast %cst_11 : f32 to vector<2x8x1xf32>
    %14 = arith.mulf %12, %13 : vector<2x8x1xf32>
    %15 = math.sqrt %14 : vector<2x8x1xf32>
    %cst_12 = arith.constant 9.99999997E-7 : f32
    %16 = vector.broadcast %cst_12 : f32 to vector<2x8x1xf32>
    %17 = arith.addf %15, %16 : vector<2x8x1xf32>
    %18 = tpu.reciprocal %17 {approx = true} : vector<2x8x1xf32> -> vector<2x8x1xf32>
    %19 = vector.shape_cast %2 : vector<1x32xf32> to vector<1x1x32xf32>
    %20 = vector.broadcast %19 : vector<1x1x32xf32> to vector<2x8x32xf32>
    %21 = arith.mulf %20, %9 : vector<2x8x32xf32>
    %22 = vector.broadcast %18 : vector<2x8x1xf32> to vector<2x8x32xf32>
    %23 = arith.mulf %21, %22 : vector<2x8x32xf32>
    %24 = vector.shape_cast %3 : vector<1x32xf32> to vector<1x1x32xf32>
    %25 = vector.broadcast %24 : vector<1x1x32xf32> to vector<2x8x32xf32>
    %26 = arith.addf %23, %25 : vector<2x8x32xf32>
    %27 = vector.shape_cast %26 : vector<2x8x32xf32> to vector<16x32xf32>
    %28 = arith.truncf %27 : vector<16x32xf32> to vector<16x32xbf16>
    %c0_13 = arith.constant 0 : index
    %c0_14 = arith.constant 0 : index
    %29 = vector.load %arg3[%c0_13, %c0_14] : memref<32x96xbf16, #tpu.memory_space<vmem>>, vector<32x96xbf16>
    %cst_15 = arith.constant dense<0.000000e+00> : vector<16x96xf32>
    %30 = tpu.matmul %28, %29, %cst_15 {dimension_numbers = #tpu.dot_dimension_numbers<[1], [0], [0], [1], [0, 0, 1, 1], [], []>} : vector<16x32xbf16>, vector<32x96xbf16>, vector<16x96xf32> -> vector<16x96xf32>
    %c0_16 = arith.constant 0 : index
    %c0_17 = arith.constant 0 : index
    %31 = vector.load %arg4[%c0_16, %c0_17] : memref<1x96xf32, #tpu.memory_space<vmem>>, vector<1x96xf32>
    %32 = vector.broadcast %31 : vector<1x96xf32> to vector<16x96xf32>
    %33 = arith.addf %30, %32 : vector<16x96xf32>
    %34 = vector.shape_cast %33 : vector<16x96xf32> to vector<2x8x96xf32>
    %cst_18 = arith.constant 0.000000e+00 : f32
    %35 = vector.broadcast %cst_18 : f32 to vector<16x32xf32>
    %36 = vector.extract_strided_slice %34 {offsets = [0, 0, 0], sizes = [2, 8, 8], strides = [1, 1, 1]} : vector<2x8x96xf32> to vector<2x8x8xf32>
    %37 = arith.truncf %36 : vector<2x8x8xf32> to vector<2x8x8xbf16>
    %38 = vector.extract_strided_slice %34 {offsets = [0, 0, 32], sizes = [2, 8, 8], strides = [1, 1, 1]} : vector<2x8x96xf32> to vector<2x8x8xf32>
    %39 = arith.truncf %38 : vector<2x8x8xf32> to vector<2x8x8xbf16>
    %40 = vector.extract_strided_slice %34 {offsets = [0, 0, 64], sizes = [2, 8, 8], strides = [1, 1, 1]} : vector<2x8x96xf32> to vector<2x8x8xf32>
    %41 = arith.truncf %40 : vector<2x8x8xf32> to vector<2x8x8xbf16>
    "tpu.trace_start"() <{level = 10 : i32, message = "bqd,bkd->bqk"}> : () -> ()
    %cst_19 = arith.constant dense<0.000000e+00> : vector<2x8x8xf32>
    %42 = tpu.matmul %37, %39, %cst_19 {dimension_numbers = #tpu.dot_dimension_numbers<[2], [2], [1], [1], [0, 0, 0, 1, 1, 1], [0], [0]>} : vector<2x8x8xbf16>, vector<2x8x8xbf16>, vector<2x8x8xf32> -> vector<2x8x8xf32>
    "tpu.trace_stop"() : () -> ()
    %cst_20 = arith.constant 0.353553385 : f32
    %43 = vector.broadcast %cst_20 : f32 to vector<2x8x8xf32>
    %44 = arith.mulf %42, %43 : vector<2x8x8xf32>
    %45 = arith.addf %44, %1 : vector<2x8x8xf32>
    %cst_21 = arith.constant dense<0xFF800000> : vector<2x8xf32>
    %46 = vector.multi_reduction <maximumf>, %45, %cst_21 [2] : vector<2x8x8xf32> to vector<2x8xf32>
    %47 = vector.shape_cast %46 : vector<2x8xf32> to vector<2x8x1xf32>
    %48 = vector.broadcast %47 : vector<2x8x1xf32> to vector<2x8x8xf32>
    %49 = arith.subf %45, %48 : vector<2x8x8xf32>
    %50 = math.exp %49 : vector<2x8x8xf32>
    %cst_22 = arith.constant dense<0.000000e+00> : vector<2x8xf32>
    %51 = vector.multi_reduction <add>, %50, %cst_22 [2] : vector<2x8x8xf32> to vector<2x8xf32>
    %52 = vector.shape_cast %51 : vector<2x8xf32> to vector<2x8x1xf32>
    %53 = tpu.reciprocal %52 {approx = true} : vector<2x8x1xf32> -> vector<2x8x1xf32>
    %54 = vector.broadcast %53 : vector<2x8x1xf32> to vector<2x8x8xf32>
    %55 = arith.mulf %50, %54 : vector<2x8x8xf32>
    %56 = arith.truncf %55 : vector<2x8x8xf32> to vector<2x8x8xbf16>
    "tpu.trace_start"() <{level = 10 : i32, message = "bqk,bkd->bqd"}> : () -> ()
    %cst_23 = arith.constant dense<0.000000e+00> : vector<2x8x8xf32>
    %57 = tpu.matmul %56, %41, %cst_23 {dimension_numbers = #tpu.dot_dimension_numbers<[2], [1], [1], [2], [0, 0, 0, 1, 1, 2], [0], [0]>} : vector<2x8x8xbf16>, vector<2x8x8xbf16>, vector<2x8x8xf32> -> vector<2x8x8xf32>
    "tpu.trace_stop"() : () -> ()
    %58 = vector.shape_cast %57 : vector<2x8x8xf32> to vector<16x8xf32>
    %59 = arith.truncf %58 : vector<16x8xf32> to vector<16x8xbf16>
    %c0_24 = arith.constant 0 : index
    %c0_25 = arith.constant 0 : index
    %c0_26 = arith.constant 0 : index
    %60 = vector.load %arg5[%c0_24, %c0_25, %c0_26] : memref<4x8x32xbf16, #tpu.memory_space<vmem>>, vector<1x8x32xbf16>
    %61 = vector.shape_cast %60 : vector<1x8x32xbf16> to vector<8x32xbf16>
    %cst_27 = arith.constant dense<0.000000e+00> : vector<16x32xf32>
    %62 = tpu.matmul %59, %61, %cst_27 {dimension_numbers = #tpu.dot_dimension_numbers<[1], [0], [0], [1], [0, 0, 1, 1], [], []>} : vector<16x8xbf16>, vector<8x32xbf16>, vector<16x32xf32> -> vector<16x32xf32>
    %63 = arith.addf %35, %62 : vector<16x32xf32>
    %64 = vector.extract_strided_slice %34 {offsets = [0, 0, 8], sizes = [2, 8, 8], strides = [1, 1, 1]} : vector<2x8x96xf32> to vector<2x8x8xf32>
    %65 = arith.truncf %64 : vector<2x8x8xf32> to vector<2x8x8xbf16>
    %66 = vector.extract_strided_slice %34 {offsets = [0, 0, 40], sizes = [2, 8, 8], strides = [1, 1, 1]} : vector<2x8x96xf32> to vector<2x8x8xf32>
    %67 = arith.truncf %66 : vector<2x8x8xf32> to vector<2x8x8xbf16>
    %68 = vector.extract_strided_slice %34 {offsets = [0, 0, 72], sizes = [2, 8, 8], strides = [1, 1, 1]} : vector<2x8x96xf32> to vector<2x8x8xf32>
    %69 = arith.truncf %68 : vector<2x8x8xf32> to vector<2x8x8xbf16>
    "tpu.trace_start"() <{level = 10 : i32, message = "bqd,bkd->bqk"}> : () -> ()
    %cst_28 = arith.constant dense<0.000000e+00> : vector<2x8x8xf32>
    %70 = tpu.matmul %65, %67, %cst_28 {dimension_numbers = #tpu.dot_dimension_numbers<[2], [2], [1], [1], [0, 0, 0, 1, 1, 1], [0], [0]>} : vector<2x8x8xbf16>, vector<2x8x8xbf16>, vector<2x8x8xf32> -> vector<2x8x8xf32>
    "tpu.trace_stop"() : () -> ()
    %cst_29 = arith.constant 0.353553385 : f32
    %71 = vector.broadcast %cst_29 : f32 to vector<2x8x8xf32>
    %72 = arith.mulf %70, %71 : vector<2x8x8xf32>
    %73 = arith.addf %72, %1 : vector<2x8x8xf32>
    %cst_30 = arith.constant dense<0xFF800000> : vector<2x8xf32>
    %74 = vector.multi_reduction <maximumf>, %73, %cst_30 [2] : vector<2x8x8xf32> to vector<2x8xf32>
    %75 = vector.shape_cast %74 : vector<2x8xf32> to vector<2x8x1xf32>
    %76 = vector.broadcast %75 : vector<2x8x1xf32> to vector<2x8x8xf32>
    %77 = arith.subf %73, %76 : vector<2x8x8xf32>
    %78 = math.exp %77 : vector<2x8x8xf32>
    %cst_31 = arith.constant dense<0.000000e+00> : vector<2x8xf32>
    %79 = vector.multi_reduction <add>, %78, %cst_31 [2] : vector<2x8x8xf32> to vector<2x8xf32>
    %80 = vector.shape_cast %79 : vector<2x8xf32> to vector<2x8x1xf32>
    %81 = tpu.reciprocal %80 {approx = true} : vector<2x8x1xf32> -> vector<2x8x1xf32>
    %82 = vector.broadcast %81 : vector<2x8x1xf32> to vector<2x8x8xf32>
    %83 = arith.mulf %78, %82 : vector<2x8x8xf32>
    %84 = arith.truncf %83 : vector<2x8x8xf32> to vector<2x8x8xbf16>
    "tpu.trace_start"() <{level = 10 : i32, message = "bqk,bkd->bqd"}> : () -> ()
    %cst_32 = arith.constant dense<0.000000e+00> : vector<2x8x8xf32>
    %85 = tpu.matmul %84, %69, %cst_32 {dimension_numbers = #tpu.dot_dimension_numbers<[2], [1], [1], [2], [0, 0, 0, 1, 1, 2], [0], [0]>} : vector<2x8x8xbf16>, vector<2x8x8xbf16>, vector<2x8x8xf32> -> vector<2x8x8xf32>
    "tpu.trace_stop"() : () -> ()
    %86 = vector.shape_cast %85 : vector<2x8x8xf32> to vector<16x8xf32>
    %87 = arith.truncf %86 : vector<16x8xf32> to vector<16x8xbf16>
    %c1 = arith.constant 1 : index
    %c0_33 = arith.constant 0 : index
    %c0_34 = arith.constant 0 : index
    %88 = vector.load %arg5[%c1, %c0_33, %c0_34] : memref<4x8x32xbf16, #tpu.memory_space<vmem>>, vector<1x8x32xbf16>
    %89 = vector.shape_cast %88 : vector<1x8x32xbf16> to vector<8x32xbf16>
    %cst_35 = arith.constant dense<0.000000e+00> : vector<16x32xf32>
    %90 = tpu.matmul %87, %89, %cst_35 {dimension_numbers = #tpu.dot_dimension_numbers<[1], [0], [0], [1], [0, 0, 1, 1], [], []>} : vector<16x8xbf16>, vector<8x32xbf16>, vector<16x32xf32> -> vector<16x32xf32>
    %91 = arith.addf %63, %90 : vector<16x32xf32>
    %92 = vector.extract_strided_slice %34 {offsets = [0, 0, 16], sizes = [2, 8, 8], strides = [1, 1, 1]} : vector<2x8x96xf32> to vector<2x8x8xf32>
    %93 = arith.truncf %92 : vector<2x8x8xf32> to vector<2x8x8xbf16>
    %94 = vector.extract_strided_slice %34 {offsets = [0, 0, 48], sizes = [2, 8, 8], strides = [1, 1, 1]} : vector<2x8x96xf32> to vector<2x8x8xf32>
    %95 = arith.truncf %94 : vector<2x8x8xf32> to vector<2x8x8xbf16>
    %96 = vector.extract_strided_slice %34 {offsets = [0, 0, 80], sizes = [2, 8, 8], strides = [1, 1, 1]} : vector<2x8x96xf32> to vector<2x8x8xf32>
    %97 = arith.truncf %96 : vector<2x8x8xf32> to vector<2x8x8xbf16>
    "tpu.trace_start"() <{level = 10 : i32, message = "bqd,bkd->bqk"}> : () -> ()
    %cst_36 = arith.constant dense<0.000000e+00> : vector<2x8x8xf32>
    %98 = tpu.matmul %93, %95, %cst_36 {dimension_numbers = #tpu.dot_dimension_numbers<[2], [2], [1], [1], [0, 0, 0, 1, 1, 1], [0], [0]>} : vector<2x8x8xbf16>, vector<2x8x8xbf16>, vector<2x8x8xf32> -> vector<2x8x8xf32>
    "tpu.trace_stop"() : () -> ()
    %cst_37 = arith.constant 0.353553385 : f32
    %99 = vector.broadcast %cst_37 : f32 to vector<2x8x8xf32>
    %100 = arith.mulf %98, %99 : vector<2x8x8xf32>
    %101 = arith.addf %100, %1 : vector<2x8x8xf32>
    %cst_38 = arith.constant dense<0xFF800000> : vector<2x8xf32>
    %102 = vector.multi_reduction <maximumf>, %101, %cst_38 [2] : vector<2x8x8xf32> to vector<2x8xf32>
    %103 = vector.shape_cast %102 : vector<2x8xf32> to vector<2x8x1xf32>
    %104 = vector.broadcast %103 : vector<2x8x1xf32> to vector<2x8x8xf32>
    %105 = arith.subf %101, %104 : vector<2x8x8xf32>
    %106 = math.exp %105 : vector<2x8x8xf32>
    %cst_39 = arith.constant dense<0.000000e+00> : vector<2x8xf32>
    %107 = vector.multi_reduction <add>, %106, %cst_39 [2] : vector<2x8x8xf32> to vector<2x8xf32>
    %108 = vector.shape_cast %107 : vector<2x8xf32> to vector<2x8x1xf32>
    %109 = tpu.reciprocal %108 {approx = true} : vector<2x8x1xf32> -> vector<2x8x1xf32>
    %110 = vector.broadcast %109 : vector<2x8x1xf32> to vector<2x8x8xf32>
    %111 = arith.mulf %106, %110 : vector<2x8x8xf32>
    %112 = arith.truncf %111 : vector<2x8x8xf32> to vector<2x8x8xbf16>
    "tpu.trace_start"() <{level = 10 : i32, message = "bqk,bkd->bqd"}> : () -> ()
    %cst_40 = arith.constant dense<0.000000e+00> : vector<2x8x8xf32>
    %113 = tpu.matmul %112, %97, %cst_40 {dimension_numbers = #tpu.dot_dimension_numbers<[2], [1], [1], [2], [0, 0, 0, 1, 1, 2], [0], [0]>} : vector<2x8x8xbf16>, vector<2x8x8xbf16>, vector<2x8x8xf32> -> vector<2x8x8xf32>
    "tpu.trace_stop"() : () -> ()
    %114 = vector.shape_cast %113 : vector<2x8x8xf32> to vector<16x8xf32>
    %115 = arith.truncf %114 : vector<16x8xf32> to vector<16x8xbf16>
    %c2 = arith.constant 2 : index
    %c0_41 = arith.constant 0 : index
    %c0_42 = arith.constant 0 : index
    %116 = vector.load %arg5[%c2, %c0_41, %c0_42] : memref<4x8x32xbf16, #tpu.memory_space<vmem>>, vector<1x8x32xbf16>
    %117 = vector.shape_cast %116 : vector<1x8x32xbf16> to vector<8x32xbf16>
    %cst_43 = arith.constant dense<0.000000e+00> : vector<16x32xf32>
    %118 = tpu.matmul %115, %117, %cst_43 {dimension_numbers = #tpu.dot_dimension_numbers<[1], [0], [0], [1], [0, 0, 1, 1], [], []>} : vector<16x8xbf16>, vector<8x32xbf16>, vector<16x32xf32> -> vector<16x32xf32>
    %119 = arith.addf %91, %118 : vector<16x32xf32>
    %120 = vector.extract_strided_slice %34 {offsets = [0, 0, 24], sizes = [2, 8, 8], strides = [1, 1, 1]} : vector<2x8x96xf32> to vector<2x8x8xf32>
    %121 = arith.truncf %120 : vector<2x8x8xf32> to vector<2x8x8xbf16>
    %122 = vector.extract_strided_slice %34 {offsets = [0, 0, 56], sizes = [2, 8, 8], strides = [1, 1, 1]} : vector<2x8x96xf32> to vector<2x8x8xf32>
    %123 = arith.truncf %122 : vector<2x8x8xf32> to vector<2x8x8xbf16>
    %124 = vector.extract_strided_slice %34 {offsets = [0, 0, 88], sizes = [2, 8, 8], strides = [1, 1, 1]} : vector<2x8x96xf32> to vector<2x8x8xf32>
    %125 = arith.truncf %124 : vector<2x8x8xf32> to vector<2x8x8xbf16>
    "tpu.trace_start"() <{level = 10 : i32, message = "bqd,bkd->bqk"}> : () -> ()
    %cst_44 = arith.constant dense<0.000000e+00> : vector<2x8x8xf32>
    %126 = tpu.matmul %121, %123, %cst_44 {dimension_numbers = #tpu.dot_dimension_numbers<[2], [2], [1], [1], [0, 0, 0, 1, 1, 1], [0], [0]>} : vector<2x8x8xbf16>, vector<2x8x8xbf16>, vector<2x8x8xf32> -> vector<2x8x8xf32>
    "tpu.trace_stop"() : () -> ()
    %cst_45 = arith.constant 0.353553385 : f32
    %127 = vector.broadcast %cst_45 : f32 to vector<2x8x8xf32>
    %128 = arith.mulf %126, %127 : vector<2x8x8xf32>
    %129 = arith.addf %128, %1 : vector<2x8x8xf32>
    %cst_46 = arith.constant dense<0xFF800000> : vector<2x8xf32>
    %130 = vector.multi_reduction <maximumf>, %129, %cst_46 [2] : vector<2x8x8xf32> to vector<2x8xf32>
    %131 = vector.shape_cast %130 : vector<2x8xf32> to vector<2x8x1xf32>
    %132 = vector.broadcast %131 : vector<2x8x1xf32> to vector<2x8x8xf32>
    %133 = arith.subf %129, %132 : vector<2x8x8xf32>
    %134 = math.exp %133 : vector<2x8x8xf32>
    %cst_47 = arith.constant dense<0.000000e+00> : vector<2x8xf32>
    %135 = vector.multi_reduction <add>, %134, %cst_47 [2] : vector<2x8x8xf32> to vector<2x8xf32>
    %136 = vector.shape_cast %135 : vector<2x8xf32> to vector<2x8x1xf32>
    %137 = tpu.reciprocal %136 {approx = true} : vector<2x8x1xf32> -> vector<2x8x1xf32>
    %138 = vector.broadcast %137 : vector<2x8x1xf32> to vector<2x8x8xf32>
    %139 = arith.mulf %134, %138 : vector<2x8x8xf32>
    %140 = arith.truncf %139 : vector<2x8x8xf32> to vector<2x8x8xbf16>
    "tpu.trace_start"() <{level = 10 : i32, message = "bqk,bkd->bqd"}> : () -> ()
    %cst_48 = arith.constant dense<0.000000e+00> : vector<2x8x8xf32>
    %141 = tpu.matmul %140, %125, %cst_48 {dimension_numbers = #tpu.dot_dimension_numbers<[2], [1], [1], [2], [0, 0, 0, 1, 1, 2], [0], [0]>} : vector<2x8x8xbf16>, vector<2x8x8xbf16>, vector<2x8x8xf32> -> vector<2x8x8xf32>
    "tpu.trace_stop"() : () -> ()
    %142 = vector.shape_cast %141 : vector<2x8x8xf32> to vector<16x8xf32>
    %143 = arith.truncf %142 : vector<16x8xf32> to vector<16x8xbf16>
    %c3 = arith.constant 3 : index
    %c0_49 = arith.constant 0 : index
    %c0_50 = arith.constant 0 : index
    %144 = vector.load %arg5[%c3, %c0_49, %c0_50] : memref<4x8x32xbf16, #tpu.memory_space<vmem>>, vector<1x8x32xbf16>
    %145 = vector.shape_cast %144 : vector<1x8x32xbf16> to vector<8x32xbf16>
    %cst_51 = arith.constant dense<0.000000e+00> : vector<16x32xf32>
    %146 = tpu.matmul %143, %145, %cst_51 {dimension_numbers = #tpu.dot_dimension_numbers<[1], [0], [0], [1], [0, 0, 1, 1], [], []>} : vector<16x8xbf16>, vector<8x32xbf16>, vector<16x32xf32> -> vector<16x32xf32>
    %147 = arith.addf %119, %146 : vector<16x32xf32>
    %c0_52 = arith.constant 0 : index
    %c0_53 = arith.constant 0 : index
    %148 = vector.load %arg6[%c0_52, %c0_53] : memref<1x32xf32, #tpu.memory_space<vmem>>, vector<1x32xf32>
    %149 = vector.broadcast %148 : vector<1x32xf32> to vector<16x32xf32>
    %150 = arith.addf %147, %149 : vector<16x32xf32>
    %151 = vector.shape_cast %150 : vector<16x32xf32> to vector<2x8x32xf32>
    %152 = arith.addf %0, %151 : vector<2x8x32xf32>
    %c0_54 = arith.constant 0 : index
    %c0_55 = arith.constant 0 : index
    %153 = vector.load %arg13[%c0_54, %c0_55] : memref<1x32xf32, #tpu.memory_space<vmem>>, vector<1x32xf32>
    %c0_56 = arith.constant 0 : index
    %c0_57 = arith.constant 0 : index
    %154 = vector.load %arg14[%c0_56, %c0_57] : memref<1x32xf32, #tpu.memory_space<vmem>>, vector<1x32xf32>
    %cst_58 = arith.constant dense<0.000000e+00> : vector<2x8xf32>
    %155 = vector.multi_reduction <add>, %152, %cst_58 [2] : vector<2x8x32xf32> to vector<2x8xf32>
    %156 = vector.shape_cast %155 : vector<2x8xf32> to vector<2x8x1xf32>
    %cst_59 = arith.constant 3.200000e+01 : f32
    %157 = vector.broadcast %cst_59 : f32 to vector<2x8x1xf32>
    %158 = arith.divf %156, %157 : vector<2x8x1xf32>
    %159 = vector.broadcast %158 : vector<2x8x1xf32> to vector<2x8x32xf32>
    %160 = arith.subf %152, %159 : vector<2x8x32xf32>
    %161 = arith.mulf %160, %160 : vector<2x8x32xf32>
    %cst_60 = arith.constant dense<0.000000e+00> : vector<2x8xf32>
    %162 = vector.multi_reduction <add>, %161, %cst_60 [2] : vector<2x8x32xf32> to vector<2x8xf32>
    %163 = vector.shape_cast %162 : vector<2x8xf32> to vector<2x8x1xf32>
    %cst_61 = arith.constant 0.0322580636 : f32
    %164 = vector.broadcast %cst_61 : f32 to vector<2x8x1xf32>
    %165 = arith.mulf %163, %164 : vector<2x8x1xf32>
    %166 = math.sqrt %165 : vector<2x8x1xf32>
    %cst_62 = arith.constant 9.99999997E-7 : f32
    %167 = vector.broadcast %cst_62 : f32 to vector<2x8x1xf32>
    %168 = arith.addf %166, %167 : vector<2x8x1xf32>
    %169 = tpu.reciprocal %168 {approx = true} : vector<2x8x1xf32> -> vector<2x8x1xf32>
    %170 = vector.shape_cast %153 : vector<1x32xf32> to vector<1x1x32xf32>
    %171 = vector.broadcast %170 : vector<1x1x32xf32> to vector<2x8x32xf32>
    %172 = arith.mulf %171, %160 : vector<2x8x32xf32>
    %173 = vector.broadcast %169 : vector<2x8x1xf32> to vector<2x8x32xf32>
    %174 = arith.mulf %172, %173 : vector<2x8x32xf32>
    %175 = vector.shape_cast %154 : vector<1x32xf32> to vector<1x1x32xf32>
    %176 = vector.broadcast %175 : vector<1x1x32xf32> to vector<2x8x32xf32>
    %177 = arith.addf %174, %176 : vector<2x8x32xf32>
    %178 = vector.shape_cast %177 : vector<2x8x32xf32> to vector<16x32xf32>
    %179 = arith.truncf %178 : vector<16x32xf32> to vector<16x32xbf16>
    %c0_63 = arith.constant 0 : index
    %c0_64 = arith.constant 0 : index
    %180 = vector.load %arg9[%c0_63, %c0_64] : memref<32x64xbf16, #tpu.memory_space<vmem>>, vector<32x64xbf16>
    %cst_65 = arith.constant dense<0.000000e+00> : vector<16x64xf32>
    %181 = tpu.matmul %179, %180, %cst_65 {dimension_numbers = #tpu.dot_dimension_numbers<[1], [0], [0], [1], [0, 0, 1, 1], [], []>} : vector<16x32xbf16>, vector<32x64xbf16>, vector<16x64xf32> -> vector<16x64xf32>
    %c0_66 = arith.constant 0 : index
    %c0_67 = arith.constant 0 : index
    %182 = vector.load %arg10[%c0_66, %c0_67] : memref<1x64xf32, #tpu.memory_space<vmem>>, vector<1x64xf32>
    %183 = vector.broadcast %182 : vector<1x64xf32> to vector<16x64xf32>
    %184 = arith.addf %181, %183 : vector<16x64xf32>
    %cst_68 = arith.constant 0.000000e+00 : f32
    %185 = vector.broadcast %cst_68 : f32 to vector<16x64xf32>
    %186 = arith.maximumf %184, %185 : vector<16x64xf32>
    %187 = arith.truncf %186 : vector<16x64xf32> to vector<16x64xbf16>
    %c0_69 = arith.constant 0 : index
    %c0_70 = arith.constant 0 : index
    %188 = vector.load %arg11[%c0_69, %c0_70] : memref<64x32xbf16, #tpu.memory_space<vmem>>, vector<64x32xbf16>
    %cst_71 = arith.constant dense<0.000000e+00> : vector<16x32xf32>
    %189 = tpu.matmul %187, %188, %cst_71 {dimension_numbers = #tpu.dot_dimension_numbers<[1], [0], [0], [1], [0, 0, 1, 1], [], []>} : vector<16x64xbf16>, vector<64x32xbf16>, vector<16x32xf32> -> vector<16x32xf32>
    %c0_72 = arith.constant 0 : index
    %c0_73 = arith.constant 0 : index
    %190 = vector.load %arg12[%c0_72, %c0_73] : memref<1x32xf32, #tpu.memory_space<vmem>>, vector<1x32xf32>
    %191 = vector.broadcast %190 : vector<1x32xf32> to vector<16x32xf32>
    %192 = arith.addf %189, %191 : vector<16x32xf32>
    %193 = vector.shape_cast %192 : vector<16x32xf32> to vector<2x8x32xf32>
    %194 = arith.addf %152, %193 : vector<2x8x32xf32>
    %c0_74 = arith.constant 0 : index
    %c0_75 = arith.constant 0 : index
    %c0_76 = arith.constant 0 : index
    %195 = vector.load %arg15[%c0_74, %c0_75, %c0_76] : memref<2x8x32xf32, #tpu.memory_space<vmem>>, vector<2x8x32xf32>
    tpu.vector_store %arg15[%c0_74, %c0_75, %c0_76], %194 {strides = array<i32>} : memref<2x8x32xf32, #tpu.memory_space<vmem>>, vector<2x8x32xf32>,
    return
  }
  func.func @transform_0(%arg0: i32) -> (i32, i32, i32) {
    %c0_i32 = arith.constant 0 : i32
    %c0_i32_0 = arith.constant 0 : i32
    %c0_i32_1 = arith.constant 0 : i32
    return %arg0, %c0_i32, %c0_i32_0 : i32, i32, i32
  }
  func.func @transform_1(%arg0: i32) -> (i32, i32, i32) {
    %c0_i32 = arith.constant 0 : i32
    %c0_i32_0 = arith.constant 0 : i32
    %c0_i32_1 = arith.constant 0 : i32
    return %arg0, %c0_i32, %c0_i32_0 : i32, i32, i32
  }
  func.func @transform_2(%arg0: i32) -> (i32, i32) {
    %c0_i32 = arith.constant 0 : i32
    %c0_i32_0 = arith.constant 0 : i32
    %c0_i32_1 = arith.constant 0 : i32
    return %c0_i32, %c0_i32_0 : i32, i32
  }
  func.func @transform_3(%arg0: i32) -> (i32, i32) {
    %c0_i32 = arith.constant 0 : i32
    %c0_i32_0 = arith.constant 0 : i32
    %c0_i32_1 = arith.constant 0 : i32
    return %c0_i32, %c0_i32_0 : i32, i32
  }
  func.func @transform_4(%arg0: i32) -> (i32, i32, i32) {
    %c0_i32 = arith.constant 0 : i32
    %c0_i32_0 = arith.constant 0 : i32
    %c0_i32_1 = arith.constant 0 : i32
    %c0_i32_2 = arith.constant 0 : i32
    return %c0_i32, %c0_i32_0, %c0_i32_1 : i32, i32, i32
  }
  func.func @transform_5(%arg0: i32) -> (i32, i32) {
    %c0_i32 = arith.constant 0 : i32
    %c0_i32_0 = arith.constant 0 : i32
    %c0_i32_1 = arith.constant 0 : i32
    return %c0_i32, %c0_i32_0 : i32, i32
  }
  func.func @transform_6(%arg0: i32) -> (i32, i32) {
    %c0_i32 = arith.constant 0 : i32
    %c0_i32_0 = arith.constant 0 : i32
    %c0_i32_1 = arith.constant 0 : i32
    return %c0_i32, %c0_i32_0 : i32, i32
  }
  func.func @transform_7(%arg0: i32) -> (i32, i32) {
    %c0_i32 = arith.constant 0 : i32
    %c0_i32_0 = arith.constant 0 : i32
    %c0_i32_1 = arith.constant 0 : i32
    return %c0_i32, %c0_i32_0 : i32, i32
  }
  func.func @transform_8(%arg0: i32) -> (i32, i32) {
    %c0_i32 = arith.constant 0 : i32
    %c0_i32_0 = arith.constant 0 : i32
    %c0_i32_1 = arith.constant 0 : i32
    return %c0_i32, %c0_i32_0 : i32, i32
  }
  func.func @transform_9(%arg0: i32) -> (i32, i32) {
    %c0_i32 = arith.constant 0 : i32
    %c0_i32_0 = arith.constant 0 : i32
    %c0_i32_1 = arith.constant 0 : i32
    return %c0_i32, %c0_i32_0 : i32, i32
  }
  func.func @transform_10(%arg0: i32) -> (i32, i32) {
    %c0_i32 = arith.constant 0 : i32
    %c0_i32_0 = arith.constant 0 : i32
    %c0_i32_1 = arith.constant 0 : i32
    return %c0_i32, %c0_i32_0 : i32, i32
  }
  func.func @transform_11(%arg0: i32) -> (i32, i32) {
    %c0_i32 = arith.constant 0 : i32
    %c0_i32_0 = arith.constant 0 : i32
    %c0_i32_1 = arith.constant 0 : i32
    return %c0_i32, %c0_i32_0 : i32, i32
  }
  func.func @transform_12(%arg0: i32) -> (i32, i32) {
    %c0_i32 = arith.constant 0 : i32
    %c0_i32_0 = arith.constant 0 : i32
    %c0_i32_1 = arith.constant 0 : i32
    return %c0_i32, %c0_i32_0 : i32, i32
  }
  func.func @transform_13(%arg0: i32) -> (i32, i32) {
    %c0_i32 = arith.constant 0 : i32
    %c0_i32_0 = arith.constant 0 : i32
    %c0_i32_1 = arith.constant 0 : i32
    return %c0_i32, %c0_i32_0 : i32, i32
  }
  func.func @transform_14(%arg0: i32) -> (i32, i32, i32) {
    %c0_i32 = arith.constant 0 : i32
    %c0_i32_0 = arith.constant 0 : i32
    %c0_i32_1 = arith.constant 0 : i32
    return %arg0, %c0_i32, %c0_i32_0 : i32, i32, i32
  }
}

</mosaic_0001>

<llo_original>
// kernel: tpu_custom_call.1
$region0: #{tpu_custom_call.1}
  #allocation0 [shape = 'u32[]', space=smem, size = 0x4, offset = 0x4, fixed_abs, tag = 'smem constant byte address 0x4 - core index']
  #allocation1 [shape = 'u32[144,128]{1,0:T(1,128)}', space=vmem, size = 0x12000, scoped, tag = 'internal scratch']
  %s0 = inlined_call_operand.vmem [shape: f32[2,8,32], index: 0, kind: input, shape index: {}]
  %s1 = inlined_call_operand.vmem [shape: f32[2,8,8], index: 1, kind: input, shape index: {}]
  %s2 = inlined_call_operand.vmem [shape: bf16[32,96], index: 2, kind: input, shape index: {}]
  %s3 = inlined_call_operand.vmem [shape: f32[1,96], index: 3, kind: input, shape index: {}]
  %s4 = inlined_call_operand.hbm [shape: bf16[4,8,32], index: 4, kind: input, shape index: {}]
  %s5 = inlined_call_operand.vmem [shape: f32[1,32], index: 5, kind: input, shape index: {}]
  %s6 = inlined_call_operand.hbm [shape: f32[1,32], index: 6, kind: input, shape index: {}]
  %s7 = inlined_call_operand.hbm [shape: f32[1,32], index: 7, kind: input, shape index: {}]
  %s8 = inlined_call_operand.hbm [shape: bf16[32,64], index: 8, kind: input, shape index: {}]
  %s9 = inlined_call_operand.hbm [shape: f32[1,64], index: 9, kind: input, shape index: {}]
  %s10 = inlined_call_operand.vmem [shape: bf16[64,32], index: 10, kind: input, shape index: {}]
  %s11 = inlined_call_operand.vmem [shape: f32[1,32], index: 11, kind: input, shape index: {}]
  %s12 = inlined_call_operand.vmem [shape: f32[1,32], index: 12, kind: input, shape index: {}]
  %s13 = inlined_call_operand.vmem [shape: f32[1,32], index: 13, kind: input, shape index: {}]
  %s14 = inlined_call_operand.hbm [shape: f32[2,8,32], index: 14, kind: output, shape index: {}]
  %s15 = sld [smem:[#allocation0]]
  $region86: #{tpu_custom_call.1} parent=0
    _
  %s17 = ssub.s32 1, %s15
  %s18 = scalar_select 0, %s17, %s15
  $region1: #{tpu_custom_call.1} parent=0
    #allocation2 [shape = 'u8[8192]{0}', space=vmem, size = 0x2000, scoped, tag = 'input window, operand 4, single buffered']
    #allocation3 [shape = 's32[1]{0}', space=sflag, size = 0x4, scoped, tag = 'scoped memory for tpu_custom_call.1']
    #allocation4 [shape = 's32[1]{0}', space=sflag, size = 0x4, scoped, tag = 'scoped memory for tpu_custom_call.1']
    #allocation5 [shape = 'u8[512]{0}', space=vmem, size = 0x400, scoped, tag = 'input window, operand 6, single buffered']
    #allocation6 [shape = 's32[1]{0}', space=sflag, size = 0x4, scoped, tag = 'scoped memory for tpu_custom_call.1']
    #allocation7 [shape = 'u8[512]{0}', space=vmem, size = 0x400, scoped, tag = 'input window, operand 7, single buffered']
    #allocation8 [shape = 'u8[8192]{0}', space=vmem, size = 0x2000, scoped, tag = 'input window, operand 8, single buffered']
    #allocation9 [shape = 's32[1]{0}', space=sflag, size = 0x4, scoped, tag = 'scoped memory for tpu_custom_call.1']
    #allocation10 [shape = 'u8[512]{0}', space=vmem, size = 0x400, scoped, tag = 'input window, operand 9, single buffered']
    #allocation11 [shape = 'u8[8192]{0}', space=vmem, size = 0x2000, scoped, tag = 'output window, operand 0, single buffered']
    %19 = vsyncpa [#allocation3], 0
    %20 = vsyncpa [#allocation6], 0
    %21 = vsyncpa [#allocation9], 0
    %22 = vsyncpa [#allocation4], 0
    // Predicated region
    $region2: #{tpu_custom_call.1} parent=1 // pred_check
      _
    $region3: #{tpu_custom_call.1} parent=1 // pred_check_branch
      %24 = sbr.rel (0) target = $region5
    $region4: #{tpu_custom_call.1} parent=1 // pred_region
      _
    $region5: #{tpu_custom_call.1} parent=1 // pred_fallthru
      _
    // Predicated region
    $region6: #{tpu_custom_call.1} parent=1 // pred_check
      _
    $region7: #{tpu_custom_call.1} parent=1 // pred_check_branch
      %26 = sbr.rel (0) target = $region9
    $region8: #{tpu_custom_call.1} parent=1 // pred_region
      _
    $region9: #{tpu_custom_call.1} parent=1 // pred_fallthru
      _
    // Predicated region
    $region10: #{tpu_custom_call.1} parent=1 // pred_check
      _
    $region11: #{tpu_custom_call.1} parent=1 // pred_check_branch
      %28 = sbr.rel (0) target = $region13
    $region12: #{tpu_custom_call.1} parent=1 // pred_region
      _
    $region13: #{tpu_custom_call.1} parent=1 // pred_fallthru
      _
    // Predicated region
    $region14: #{tpu_custom_call.1} parent=1 // pred_check
      _
    $region15: #{tpu_custom_call.1} parent=1 // pred_check_branch
      %30 = sbr.rel (0) target = $region17
    $region16: #{tpu_custom_call.1} parent=1 // pred_region
      _
    $region17: #{tpu_custom_call.1} parent=1 // pred_fallthru
      _
    // Predicated region
    $region18: #{tpu_custom_call.1} parent=1 // pred_check
      _
    $region19: #{tpu_custom_call.1} parent=1 // pred_check_branch
      %32 = sbr.rel (0) target = $region21
    $region20: #{tpu_custom_call.1} parent=1 // pred_region
      %s34 = ssub.s32 256, 256
      %35 = vsyncadd [#allocation3], %s34
      %s36 = sshll.u32 [#allocation2], 4
      %s37 = int_to_ptr.vmem [resolvable:$true] %s36
      %42 = dma.hbm_to_vmem [thread:$0]  %s4, 256, %s37, [#allocation3], 64, 64, 4
    $region21: #{tpu_custom_call.1} parent=1 // pred_fallthru
      _
    // Predicated region
    $region22: #{tpu_custom_call.1} parent=1 // pred_check
      _
    $region23: #{tpu_custom_call.1} parent=1 // pred_check_branch
      %44 = sbr.rel (0) target = $region25
    $region24: #{tpu_custom_call.1} parent=1 // pred_region
      _
    $region25: #{tpu_custom_call.1} parent=1 // pred_fallthru
      _
    // Predicated region
    $region26: #{tpu_custom_call.1} parent=1 // pred_check
      _
    $region27: #{tpu_custom_call.1} parent=1 // pred_check_branch
      %46 = sbr.rel (0) target = $region29
    $region28: #{tpu_custom_call.1} parent=1 // pred_region
      %s48 = ssub.s32 16, 16
      %49 = vsyncadd [#allocation6], %s48
      %s51 = sshll.u32 [#allocation5], 4
      %s52 = int_to_ptr.vmem [resolvable:$true] %s51
      %54 = dma.hbm_to_vmem [thread:$0]  %s6, 16, %s52, [#allocation6]
    $region29: #{tpu_custom_call.1} parent=1 // pred_fallthru
      _
    // Predicated region
    $region30: #{tpu_custom_call.1} parent=1 // pred_check
      _
    $region31: #{tpu_custom_call.1} parent=1 // pred_check_branch
      %56 = sbr.rel (0) target = $region33
    $region32: #{tpu_custom_call.1} parent=1 // pred_region
      %s58 = ssub.s32 16, 16
      %59 = vsyncadd [#allocation6], %s58
      %s61 = sshll.u32 [#allocation7], 4
      %s62 = int_to_ptr.vmem [resolvable:$true] %s61
      %64 = dma.hbm_to_vmem [thread:$0]  %s7, 16, %s62, [#allocation6]
    $region33: #{tpu_custom_call.1} parent=1 // pred_fallthru
      _
    // Predicated region
    $region34: #{tpu_custom_call.1} parent=1 // pred_check
      _
    $region35: #{tpu_custom_call.1} parent=1 // pred_check_branch
      %66 = sbr.rel (0) target = $region37
    $region36: #{tpu_custom_call.1} parent=1 // pred_region
      %s68 = ssub.s32 256, 256
      %69 = vsyncadd [#allocation9], %s68
      %s70 = sshll.u32 [#allocation8], 4
      %s71 = int_to_ptr.vmem [resolvable:$true] %s70
      %76 = dma.hbm_to_vmem [thread:$0]  %s8, 256, %s71, [#allocation9], 64, 64, 4
    $region37: #{tpu_custom_call.1} parent=1 // pred_fallthru
      _
    // Predicated region
    $region38: #{tpu_custom_call.1} parent=1 // pred_check
      _
    $region39: #{tpu_custom_call.1} parent=1 // pred_check_branch
      %78 = sbr.rel (0) target = $region41
    $region40: #{tpu_custom_call.1} parent=1 // pred_region
      %s80 = ssub.s32 16, 16
      %81 = vsyncadd [#allocation9], %s80
      %s83 = sshll.u32 [#allocation10], 4
      %s84 = int_to_ptr.vmem [resolvable:$true] %s83
      %86 = dma.hbm_to_vmem [thread:$0]  %s9, 16, %s84, [#allocation9]
    $region41: #{tpu_custom_call.1} parent=1 // pred_fallthru
      _
    // Predicated region
    $region42: #{tpu_custom_call.1} parent=1 // pred_check
      _
    $region43: #{tpu_custom_call.1} parent=1 // pred_check_branch
      %88 = sbr.rel (0) target = $region45
    $region44: #{tpu_custom_call.1} parent=1 // pred_region
      _
    $region45: #{tpu_custom_call.1} parent=1 // pred_fallthru
      _
    // Predicated region
    $region46: #{tpu_custom_call.1} parent=1 // pred_check
      _
    $region47: #{tpu_custom_call.1} parent=1 // pred_check_branch
      %90 = sbr.rel (0) target = $region49
    $region48: #{tpu_custom_call.1} parent=1 // pred_region
      _
    $region49: #{tpu_custom_call.1} parent=1 // pred_fallthru
      _
    // Predicated region
    $region50: #{tpu_custom_call.1} parent=1 // pred_check
      _
    $region51: #{tpu_custom_call.1} parent=1 // pred_check_branch
      %92 = sbr.rel (0) target = $region53
    $region52: #{tpu_custom_call.1} parent=1 // pred_region
      _
    $region53: #{tpu_custom_call.1} parent=1 // pred_fallthru
      _
    // Predicated region
    $region54: #{tpu_custom_call.1} parent=1 // pred_check
      _
    $region55: #{tpu_custom_call.1} parent=1 // pred_check_branch
      %94 = sbr.rel (0) target = $region57
    $region56: #{tpu_custom_call.1} parent=1 // pred_region
      _
    $region57: #{tpu_custom_call.1} parent=1 // pred_fallthru
      _
    // Predicated region
    $region58: #{tpu_custom_call.1} parent=1 // pred_check
      _
    $region59: #{tpu_custom_call.1} parent=1 // pred_check_branch
      %96 = sbr.rel (0) target = $region61
    $region60: #{tpu_custom_call.1} parent=1 // pred_region
      %97 = dma.done [#allocation3], 256
    $region61: #{tpu_custom_call.1} parent=1 // pred_fallthru
      _
    // Predicated region
    $region62: #{tpu_custom_call.1} parent=1 // pred_check
      _
    $region63: #{tpu_custom_call.1} parent=1 // pred_check_branch
      %99 = sbr.rel (0) target = $region65
    $region64: #{tpu_custom_call.1} parent=1 // pred_region
      %100 = dma.done [#allocation6], 16
    $region65: #{tpu_custom_call.1} parent=1 // pred_fallthru
      _
    // Predicated region
    $region66: #{tpu_custom_call.1} parent=1 // pred_check
      _
    $region67: #{tpu_custom_call.1} parent=1 // pred_check_branch
      %102 = sbr.rel (0) target = $region69
    $region68: #{tpu_custom_call.1} parent=1 // pred_region
      %103 = dma.done [#allocation6], 16
    $region69: #{tpu_custom_call.1} parent=1 // pred_fallthru
      _
    // Predicated region
    $region70: #{tpu_custom_call.1} parent=1 // pred_check
      _
    $region71: #{tpu_custom_call.1} parent=1 // pred_check_branch
      %105 = sbr.rel (0) target = $region73
    $region72: #{tpu_custom_call.1} parent=1 // pred_region
      %106 = dma.done [#allocation9], 256
    $region73: #{tpu_custom_call.1} parent=1 // pred_fallthru
      _
    // Predicated region
    $region74: #{tpu_custom_call.1} parent=1 // pred_check
      _
    $region75: #{tpu_custom_call.1} parent=1 // pred_check_branch
      %108 = sbr.rel (0) target = $region77
    $region76: #{tpu_custom_call.1} parent=1 // pred_region
      %109 = dma.done [#allocation9], 16
    $region77: #{tpu_custom_call.1} parent=1 // pred_fallthru
      _
    %v111 = vld [vmem:[%s0] sm:$0xff]
    %v112 = vld [vmem:[%s0 + $0x8] sm:$0xff]
    %v113 = vld [vmem:[%s1] sm:$0xff]
    %v114 = vld [vmem:[%s1 + $0x8] sm:$0xff]
    %v115 = vld [vmem:[#allocation5] sm:$0x1]
    %v116 = vld [vmem:[#allocation7] sm:$0x1]
    %vm117 = vcmask 261120
    %v118 = vsel %vm117, %v111, 0.0
    %119 = vadd.xlane.f32.xlu0 %v118
    %v120 = vpop.xlane.xlu0 %119
    %v121 = vsel %vm117, %v112, 0.0
    %122 = vadd.xlane.f32.xlu0 %v121
    %v123 = vpop.xlane.xlu0 %122
    %v124 = vrcp.pop 32.0
    %v125 = vmul.f32 %v120, %v124
    %v126 = vmul.f32 %v123, %v124
    %v127 = vsub.f32 %v111, %v125
    %v128 = vsub.f32 %v112, %v126
    %v129 = vmul.f32 %v127, %v127
    %v130 = vmul.f32 %v128, %v128
    %v131 = vsel %vm117, %v129, 0.0
    %132 = vadd.xlane.f32.xlu0 %v131
    %v133 = vpop.xlane.xlu0 %132
    %v134 = vsel %vm117, %v130, 0.0
    %135 = vadd.xlane.f32.xlu0 %v134
    %v136 = vpop.xlane.xlu0 %135
    %v137 = vmul.f32 %v133, 0.032258064
    %v138 = vmul.f32 %v136, 0.032258064
    %v139 = vrsqrt.pop %v137
    %v140 = vmul.f32 %v137, %v139
    %vm141 = vcmp.eq.f32.partialorder %v137, inf
    %v142 = vsel %vm141, %v137, %v140
    %vm143 = vcmp.eq.f32.partialorder %v137, 0.0
    %v144 = vand.u32 %v137, 2147483648
    %v145 = vsel %vm143, %v144, %v142
    %v146 = vrsqrt.pop %v138
    %v147 = vmul.f32 %v138, %v146
    %vm148 = vcmp.eq.f32.partialorder %v138, inf
    %v149 = vsel %vm148, %v138, %v147
    %vm150 = vcmp.eq.f32.partialorder %v138, 0.0
    %v151 = vand.u32 %v138, 2147483648
    %v152 = vsel %vm150, %v151, %v149
    %v153 = vadd.f32 %v145, 1e-06
    %v154 = vadd.f32 %v152, 1e-06
    %v155 = vrcp.pop %v153
    %v156 = vrcp.pop %v154
    %v158 = vlaneseq
    %v159 = vshrl.u32 %v158, 7
    %v160 = vsub.s32 0, %v159
    %v161 = vrot.slane %v115, %v160
    %v163 = vmul.f32 %v161, %v127
    %v164 = vmul.f32 %v161, %v128
    %v165 = vmul.f32 %v163, %v155
    %v166 = vmul.f32 %v164, %v156
    %v168 = vlaneseq
    %v169 = vshrl.u32 %v168, 7
    %v170 = vsub.s32 0, %v169
    %v171 = vrot.slane %v116, %v170
    %v173 = vadd.f32 %v165, %v171
    %v174 = vadd.f32 %v166, %v171
    %v175 = vpack.c.bf16 %v174, %v173
    %v176 = vld [vmem:[%s2] sm:$0xf]
    %v177 = vld [vmem:[%s2 + $0x4] sm:$0xf]
    %v178 = vld [vmem:[%s2 + $0x8] sm:$0xf]
    %v179 = vld [vmem:[%s2 + $0xc] sm:$0xf]
    %v180 = vld [vmem:[%s3] sm:$0x1]
    %v182 = vlaneseq
    %v183 = vshrl.u32 %v182, 7
    %v184 = vsub.s32 0, %v183
    %v185 = vrot.slane %v180, %v184
    %v191 = vunpack.c.l.b16 %v176
    %v192 = vunpack.c.l.b16 %v177
    %v193 = vunpack.c.l.b16 %v178
    %v194 = vunpack.c.l.b16 %v179
    %v195 = vpack.c.b16 %v192, %v191
    %v196 = vpack.c.b16 %v194, %v193
    %v200 = vsel %vm117, %v175, 0
    %202 = vmatprep.subr.bf16.mxu0 0
    %203 = vmatpush1.bf16.msra.mxu0 0
    %204 = vmatprep.subr.bf16.mxu0 0
    %205 = vmatpush1.bf16.msra.mxu0 0
    %206 = vmatprep.subr.bf16.mxu0 0
    %207 = vmatpush1.bf16.msra.mxu0 0
    %208 = vmatprep.subr.bf16.mxu0 0
    %209 = vmatpush1.bf16.msra.mxu0 0
    %210 = vmatprep.subr.bf16.mxu0 0
    %211 = vmatpush1.bf16.msra.mxu0 0
    %212 = vmatprep.subr.bf16.mxu0 0
    %213 = vmatpush1.bf16.msra.mxu0 0
    %214 = vmatprep.subr.bf16.mxu0 0
    %215 = vmatpush1.bf16.msra.mxu0 %v196
    %216 = vmatprep.subr.bf16.mxu0 0
    %217 = vmatpush1.bf16.msra.mxu0 %v195
    %218 = vmatprep.subr.bf16.mxu0 0
    %219 = vmatpush2.bf16.msra.mxu0 0
    %220 = vmatprep.subr.bf16.mxu0 0
    %221 = vmatpush2.bf16.msra.mxu0 0
    %222 = vmatprep.subr.bf16.mxu0 0
    %223 = vmatpush2.bf16.msra.mxu0 0
    %224 = vmatprep.subr.bf16.mxu0 0
    %225 = vmatpush2.bf16.msra.mxu0 0
    %226 = vmatprep.subr.bf16.mxu0 0
    %227 = vmatpush2.bf16.msra.mxu0 0
    %228 = vmatprep.subr.bf16.mxu0 0
    %229 = vmatpush2.bf16.msra.mxu0 0
    %230 = vmatprep.subr.bf16.mxu0 0
    %231 = vmatpush2.bf16.msra.mxu0 0
    %232 = vmatprep.subr.bf16.mxu0 0
    %233 = vmatpush2.bf16.msra.mxu0 0
    %234 = vmatprep.mubr.bf16.mxu0 0
    %235 = vmatmul.mubr.bf16.gmra.mxu0 %v200
    %v236 = vpop.f32.mrf.mxu0
    %v237 = vadd.f32 %v185, %v236
    %v238 = vpop.f32.mrf.mxu0
    %v239 = vpop.f32.mrf.mxu0
    %v240 = vadd.f32 %v185, %v239
    %v241 = vpop.f32.mrf.mxu0
    %242 = vdwg.mxu0
    %v243 = vpack.c.bf16 %v237, %v237
    %v244 = vpack.c.bf16 %v240, %v240
    %246 = vrot.lane.b32.xlu0 %v243, 96
    %v247 = vpop.permute.xlu0 %246
    %vm248 = vcmask 64512
    %v250 = vsel %vm248, %v243, 0
    %v253 = vsel %vm248, %v247, 0
    %255 = vmatprep.subr.bf16.mxu0 0
    %256 = vmatpush1.bf16.xpose.msra.mxu0 0
    %257 = vmatprep.subr.bf16.mxu0 0
    %258 = vmatpush1.bf16.xpose.msra.mxu0 0
    %259 = vmatprep.subr.bf16.mxu0 0
    %260 = vmatpush1.bf16.xpose.msra.mxu0 0
    %261 = vmatprep.subr.bf16.mxu0 0
    %262 = vmatpush1.bf16.xpose.msra.mxu0 0
    %263 = vmatprep.subr.bf16.mxu0 0
    %264 = vmatpush1.bf16.xpose.msra.mxu0 0
    %265 = vmatprep.subr.bf16.mxu0 0
    %266 = vmatpush1.bf16.xpose.msra.mxu0 0
    %267 = vmatprep.subr.bf16.mxu0 0
    %268 = vmatpush1.bf16.xpose.msra.mxu0 0
    %269 = vmatprep.subr.bf16.mxu0 0
    %270 = vmatpush1.bf16.xpose.msra.mxu0 %v253
    %271 = vmatprep.subr.bf16.mxu0 0
    %272 = vmatpush2.bf16.xpose.msra.mxu0 0
    %273 = vmatprep.subr.bf16.mxu0 0
    %274 = vmatpush2.bf16.xpose.msra.mxu0 0
    %275 = vmatprep.subr.bf16.mxu0 0
    %276 = vmatpush2.bf16.xpose.msra.mxu0 0
    %277 = vmatprep.subr.bf16.mxu0 0
    %278 = vmatpush2.bf16.xpose.msra.mxu0 0
    %279 = vmatprep.subr.bf16.mxu0 0
    %280 = vmatpush2.bf16.xpose.msra.mxu0 0
    %281 = vmatprep.subr.bf16.mxu0 0
    %282 = vmatpush2.bf16.xpose.msra.mxu0 0
    %283 = vmatprep.subr.bf16.mxu0 0
    %284 = vmatpush2.bf16.xpose.msra.mxu0 0
    %285 = vmatprep.subr.bf16.mxu0 0
    %286 = vmatpush2.bf16.xpose.msra.mxu0 0
    %287 = vmatprep.mubr.bf16.mxu0 0
    %288 = vmatmul.mubr.bf16.gmra.mxu0 %v250
    %v289 = vpop.f32.mrf.mxu0
    %v290 = vadd.f32 0.0, %v289
    %v291 = vpop.f32.mrf.mxu0
    %v292 = vpop.f32.mrf.mxu0
    %v293 = vpop.f32.mrf.mxu0
    %294 = vdwg.mxu0
    %296 = vrot.lane.b32.xlu0 %v244, 96
    %v297 = vpop.permute.xlu0 %296
    %v299 = vsel %vm248, %v244, 0
    %v302 = vsel %vm248, %v297, 0
    %304 = vmatprep.subr.bf16.mxu0 0
    %305 = vmatpush1.bf16.xpose.msra.mxu0 0
    %306 = vmatprep.subr.bf16.mxu0 0
    %307 = vmatpush1.bf16.xpose.msra.mxu0 0
    %308 = vmatprep.subr.bf16.mxu0 0
    %309 = vmatpush1.bf16.xpose.msra.mxu0 0
    %310 = vmatprep.subr.bf16.mxu0 0
    %311 = vmatpush1.bf16.xpose.msra.mxu0 0
    %312 = vmatprep.subr.bf16.mxu0 0
    %313 = vmatpush1.bf16.xpose.msra.mxu0 0
    %314 = vmatprep.subr.bf16.mxu0 0
    %315 = vmatpush1.bf16.xpose.msra.mxu0 0
    %316 = vmatprep.subr.bf16.mxu0 0
    %317 = vmatpush1.bf16.xpose.msra.mxu0 0
    %318 = vmatprep.subr.bf16.mxu0 0
    %319 = vmatpush1.bf16.xpose.msra.mxu0 %v302
    %320 = vmatprep.subr.bf16.mxu0 0
    %321 = vmatpush2.bf16.xpose.msra.mxu0 0
    %322 = vmatprep.subr.bf16.mxu0 0
    %323 = vmatpush2.bf16.xpose.msra.mxu0 0
    %324 = vmatprep.subr.bf16.mxu0 0
    %325 = vmatpush2.bf16.xpose.msra.mxu0 0
    %326 = vmatprep.subr.bf16.mxu0 0
    %327 = vmatpush2.bf16.xpose.msra.mxu0 0
    %328 = vmatprep.subr.bf16.mxu0 0
    %329 = vmatpush2.bf16.xpose.msra.mxu0 0
    %330 = vmatprep.subr.bf16.mxu0 0
    %331 = vmatpush2.bf16.xpose.msra.mxu0 0
    %332 = vmatprep.subr.bf16.mxu0 0
    %333 = vmatpush2.bf16.xpose.msra.mxu0 0
    %334 = vmatprep.subr.bf16.mxu0 0
    %335 = vmatpush2.bf16.xpose.msra.mxu0 0
    %336 = vmatprep.mubr.bf16.mxu0 0
    %337 = vmatmul.mubr.bf16.gmra.mxu0 %v299
    %v338 = vpop.f32.mrf.mxu0
    %v339 = vadd.f32 0.0, %v338
    %v340 = vpop.f32.mrf.mxu0
    %v341 = vpop.f32.mrf.mxu0
    %v342 = vpop.f32.mrf.mxu0
    %343 = vdwg.mxu0
    %v344 = vmul.f32 %v290, 0.35355338
    %v345 = vmul.f32 %v339, 0.35355338
    %v346 = vadd.f32 %v344, %v113
    %v347 = vadd.f32 %v345, %v114
    %v348 = vsel %vm248, %v346, -inf
    %349 = vmax.xlane.f32.xlu0 %v348
    %v350 = vpop.xlane.xlu0 %349
    %v351 = vsel %vm248, %v347, -inf
    %352 = vmax.xlane.f32.xlu0 %v351
    %v353 = vpop.xlane.xlu0 %352
    %v354 = vsub.f32 %v346, %v350
    %v355 = vsub.f32 %v347, %v353
    %v356 = vmul.f32 %v354, 1.442695
    %v357 = vpow.pop %v356
    %v358 = vmul.f32 %v355, 1.442695
    %v359 = vpow.pop %v358
    %v360 = vsel %vm248, %v357, 0.0
    %361 = vadd.xlane.f32.xlu0 %v360
    %v362 = vpop.xlane.xlu0 %361
    %v363 = vsel %vm248, %v359, 0.0
    %364 = vadd.xlane.f32.xlu0 %v363
    %v365 = vpop.xlane.xlu0 %364
    %v366 = vrcp.pop %v362
    %v367 = vrcp.pop %v365
    %v368 = vmul.f32 %v357, %v366
    %v369 = vmul.f32 %v359, %v367
    %v370 = vpack.c.bf16 %v368, %v368
    %v371 = vpack.c.bf16 %v369, %v369
    %372 = vrot.lane.b32.xlu0 %v243, 64
    %v373 = vpop.permute.xlu0 %372
    %v375 = vsel %vm248, %v370, 0
    %vm377 = vcmask 1043456
    %v379 = vsel %vm377, %v373, 0
    %381 = vmatprep.subr.bf16.mxu0 0
    %382 = vmatpush1.bf16.msra.mxu0 0
    %383 = vmatprep.subr.bf16.mxu0 0
    %384 = vmatpush1.bf16.msra.mxu0 0
    %385 = vmatprep.subr.bf16.mxu0 0
    %386 = vmatpush1.bf16.msra.mxu0 0
    %387 = vmatprep.subr.bf16.mxu0 0
    %388 = vmatpush1.bf16.msra.mxu0 0
    %389 = vmatprep.subr.bf16.mxu0 0
    %390 = vmatpush1.bf16.msra.mxu0 0
    %391 = vmatprep.subr.bf16.mxu0 0
    %392 = vmatpush1.bf16.msra.mxu0 0
    %393 = vmatprep.subr.bf16.mxu0 0
    %394 = vmatpush1.bf16.msra.mxu0 0
    %395 = vmatprep.subr.bf16.mxu0 0
    %396 = vmatpush1.bf16.msra.mxu0 %v379
    %397 = vmatprep.subr.bf16.mxu0 0
    %398 = vmatpush2.bf16.msra.mxu0 0
    %399 = vmatprep.subr.bf16.mxu0 0
    %400 = vmatpush2.bf16.msra.mxu0 0
    %401 = vmatprep.subr.bf16.mxu0 0
    %402 = vmatpush2.bf16.msra.mxu0 0
    %403 = vmatprep.subr.bf16.mxu0 0
    %404 = vmatpush2.bf16.msra.mxu0 0
    %405 = vmatprep.subr.bf16.mxu0 0
    %406 = vmatpush2.bf16.msra.mxu0 0
    %407 = vmatprep.subr.bf16.mxu0 0
    %408 = vmatpush2.bf16.msra.mxu0 0
    %409 = vmatprep.subr.bf16.mxu0 0
    %410 = vmatpush2.bf16.msra.mxu0 0
    %411 = vmatprep.subr.bf16.mxu0 0
    %412 = vmatpush2.bf16.msra.mxu0 0
    %413 = vmatprep.mubr.bf16.mxu0 0
    %414 = vmatmul.mubr.bf16.gmra.mxu0 %v375
    %v415 = vpop.f32.mrf.mxu0
    %v416 = vadd.f32 0.0, %v415
    %v417 = vpop.f32.mrf.mxu0
    %v418 = vpop.f32.mrf.mxu0
    %v419 = vpop.f32.mrf.mxu0
    %420 = vdwg.mxu0
    %421 = vrot.lane.b32.xlu0 %v244, 64
    %v422 = vpop.permute.xlu0 %421
    %v424 = vsel %vm248, %v371, 0
    %v427 = vsel %vm377, %v422, 0
    %429 = vmatprep.subr.bf16.mxu0 0
    %430 = vmatpush1.bf16.msra.mxu0 0
    %431 = vmatprep.subr.bf16.mxu0 0
    %432 = vmatpush1.bf16.msra.mxu0 0
    %433 = vmatprep.subr.bf16.mxu0 0
    %434 = vmatpush1.bf16.msra.mxu0 0
    %435 = vmatprep.subr.bf16.mxu0 0
    %436 = vmatpush1.bf16.msra.mxu0 0
    %437 = vmatprep.subr.bf16.mxu0 0
    %438 = vmatpush1.bf16.msra.mxu0 0
    %439 = vmatprep.subr.bf16.mxu0 0
    %440 = vmatpush1.bf16.msra.mxu0 0
    %441 = vmatprep.subr.bf16.mxu0 0
    %442 = vmatpush1.bf16.msra.mxu0 0
    %443 = vmatprep.subr.bf16.mxu0 0
    %444 = vmatpush1.bf16.msra.mxu0 %v427
    %445 = vmatprep.subr.bf16.mxu0 0
    %446 = vmatpush2.bf16.msra.mxu0 0
    %447 = vmatprep.subr.bf16.mxu0 0
    %448 = vmatpush2.bf16.msra.mxu0 0
    %449 = vmatprep.subr.bf16.mxu0 0
    %450 = vmatpush2.bf16.msra.mxu0 0
    %451 = vmatprep.subr.bf16.mxu0 0
    %452 = vmatpush2.bf16.msra.mxu0 0
    %453 = vmatprep.subr.bf16.mxu0 0
    %454 = vmatpush2.bf16.msra.mxu0 0
    %455 = vmatprep.subr.bf16.mxu0 0
    %456 = vmatpush2.bf16.msra.mxu0 0
    %457 = vmatprep.subr.bf16.mxu0 0
    %458 = vmatpush2.bf16.msra.mxu0 0
    %459 = vmatprep.subr.bf16.mxu0 0
    %460 = vmatpush2.bf16.msra.mxu0 0
    %461 = vmatprep.mubr.bf16.mxu0 0
    %462 = vmatmul.mubr.bf16.gmra.mxu0 %v424
    %v463 = vpop.f32.mrf.mxu0
    %v464 = vadd.f32 0.0, %v463
    %v465 = vpop.f32.mrf.mxu0
    %v466 = vpop.f32.mrf.mxu0
    %v467 = vpop.f32.mrf.mxu0
    %468 = vdwg.mxu0
    %v469 = vpack.c.bf16 %v464, %v416
    %v470 = vld [vmem:[#allocation2] sm:$0xf]
    %471 = vrot.lane.b32.xlu0 %v243, 120
    %v472 = vpop.permute.xlu0 %471
    %473 = vrot.lane.b32.xlu0 %v243, 88
    %v474 = vpop.permute.xlu0 %473
    %v476 = vsel %vm248, %v472, 0
    %v479 = vsel %vm248, %v474, 0
    %481 = vmatprep.subr.bf16.mxu0 0
    %482 = vmatpush1.bf16.xpose.msra.mxu0 0
    %483 = vmatprep.subr.bf16.mxu0 0
    %484 = vmatpush1.bf16.xpose.msra.mxu0 0
    %485 = vmatprep.subr.bf16.mxu0 0
    %486 = vmatpush1.bf16.xpose.msra.mxu0 0
    %487 = vmatprep.subr.bf16.mxu0 0
    %488 = vmatpush1.bf16.xpose.msra.mxu0 0
    %489 = vmatprep.subr.bf16.mxu0 0
    %490 = vmatpush1.bf16.xpose.msra.mxu0 0
    %491 = vmatprep.subr.bf16.mxu0 0
    %492 = vmatpush1.bf16.xpose.msra.mxu0 0
    %493 = vmatprep.subr.bf16.mxu0 0
    %494 = vmatpush1.bf16.xpose.msra.mxu0 0
    %495 = vmatprep.subr.bf16.mxu0 0
    %496 = vmatpush1.bf16.xpose.msra.mxu0 %v479
    %497 = vmatprep.subr.bf16.mxu0 0
    %498 = vmatpush2.bf16.xpose.msra.mxu0 0
    %499 = vmatprep.subr.bf16.mxu0 0
    %500 = vmatpush2.bf16.xpose.msra.mxu0 0
    %501 = vmatprep.subr.bf16.mxu0 0
    %502 = vmatpush2.bf16.xpose.msra.mxu0 0
    %503 = vmatprep.subr.bf16.mxu0 0
    %504 = vmatpush2.bf16.xpose.msra.mxu0 0
    %505 = vmatprep.subr.bf16.mxu0 0
    %506 = vmatpush2.bf16.xpose.msra.mxu0 0
    %507 = vmatprep.subr.bf16.mxu0 0
    %508 = vmatpush2.bf16.xpose.msra.mxu0 0
    %509 = vmatprep.subr.bf16.mxu0 0
    %510 = vmatpush2.bf16.xpose.msra.mxu0 0
    %511 = vmatprep.subr.bf16.mxu0 0
    %512 = vmatpush2.bf16.xpose.msra.mxu0 0
    %513 = vmatprep.mubr.bf16.mxu0 0
    %514 = vmatmul.mubr.bf16.gmra.mxu0 %v476
    %v515 = vpop.f32.mrf.mxu0
    %v516 = vadd.f32 0.0, %v515
    %v517 = vpop.f32.mrf.mxu0
    %v518 = vpop.f32.mrf.mxu0
    %v519 = vpop.f32.mrf.mxu0
    %520 = vdwg.mxu0
    %521 = vrot.lane.b32.xlu0 %v244, 120
    %v522 = vpop.permute.xlu0 %521
    %523 = vrot.lane.b32.xlu0 %v244, 88
    %v524 = vpop.permute.xlu0 %523
    %v526 = vsel %vm248, %v522, 0
    %v529 = vsel %vm248, %v524, 0
    %531 = vmatprep.subr.bf16.mxu0 0
    %532 = vmatpush1.bf16.xpose.msra.mxu0 0
    %533 = vmatprep.subr.bf16.mxu0 0
    %534 = vmatpush1.bf16.xpose.msra.mxu0 0
    %535 = vmatprep.subr.bf16.mxu0 0
    %536 = vmatpush1.bf16.xpose.msra.mxu0 0
    %537 = vmatprep.subr.bf16.mxu0 0
    %538 = vmatpush1.bf16.xpose.msra.mxu0 0
    %539 = vmatprep.subr.bf16.mxu0 0
    %540 = vmatpush1.bf16.xpose.msra.mxu0 0
    %541 = vmatprep.subr.bf16.mxu0 0
    %542 = vmatpush1.bf16.xpose.msra.mxu0 0
    %543 = vmatprep.subr.bf16.mxu0 0
    %544 = vmatpush1.bf16.xpose.msra.mxu0 0
    %545 = vmatprep.subr.bf16.mxu0 0
    %546 = vmatpush1.bf16.xpose.msra.mxu0 %v529
    %547 = vmatprep.subr.bf16.mxu0 0
    %548 = vmatpush2.bf16.xpose.msra.mxu0 0
    %549 = vmatprep.subr.bf16.mxu0 0
    %550 = vmatpush2.bf16.xpose.msra.mxu0 0
    %551 = vmatprep.subr.bf16.mxu0 0
    %552 = vmatpush2.bf16.xpose.msra.mxu0 0
    %553 = vmatprep.subr.bf16.mxu0 0
    %554 = vmatpush2.bf16.xpose.msra.mxu0 0
    %555 = vmatprep.subr.bf16.mxu0 0
    %556 = vmatpush2.bf16.xpose.msra.mxu0 0
    %557 = vmatprep.subr.bf16.mxu0 0
    %558 = vmatpush2.bf16.xpose.msra.mxu0 0
    %559 = vmatprep.subr.bf16.mxu0 0
    %560 = vmatpush2.bf16.xpose.msra.mxu0 0
    %561 = vmatprep.subr.bf16.mxu0 0
    %562 = vmatpush2.bf16.xpose.msra.mxu0 0
    %563 = vmatprep.mubr.bf16.mxu0 0
    %564 = vmatmul.mubr.bf16.gmra.mxu0 %v526
    %v565 = vpop.f32.mrf.mxu0
    %v566 = vadd.f32 0.0, %v565
    %v567 = vpop.f32.mrf.mxu0
    %v568 = vpop.f32.mrf.mxu0
    %v569 = vpop.f32.mrf.mxu0
    %570 = vdwg.mxu0
    %v571 = vmul.f32 %v516, 0.35355338
    %v572 = vmul.f32 %v566, 0.35355338
    %v573 = vadd.f32 %v571, %v113
    %v574 = vadd.f32 %v572, %v114
    %v575 = vsel %vm248, %v573, -inf
    %576 = vmax.xlane.f32.xlu0 %v575
    %v577 = vpop.xlane.xlu0 %576
    %v578 = vsel %vm248, %v574, -inf
    %579 = vmax.xlane.f32.xlu0 %v578
    %v580 = vpop.xlane.xlu0 %579
    %v581 = vsub.f32 %v573, %v577
    %v582 = vsub.f32 %v574, %v580
    %v583 = vmul.f32 %v581, 1.442695
    %v584 = vpow.pop %v583
    %v585 = vmul.f32 %v582, 1.442695
    %v586 = vpow.pop %v585
    %v587 = vsel %vm248, %v584, 0.0
    %588 = vadd.xlane.f32.xlu0 %v587
    %v589 = vpop.xlane.xlu0 %588
    %v590 = vsel %vm248, %v586, 0.0
    %591 = vadd.xlane.f32.xlu0 %v590
    %v592 = vpop.xlane.xlu0 %591
    %v593 = vrcp.pop %v589
    %v594 = vrcp.pop %v592
    %v595 = vmul.f32 %v584, %v593
    %v596 = vmul.f32 %v586, %v594
    %v597 = vpack.c.bf16 %v595, %v595
    %v598 = vpack.c.bf16 %v596, %v596
    %599 = vrot.lane.b32.xlu0 %v243, 56
    %v600 = vpop.permute.xlu0 %599
    %v602 = vsel %vm248, %v597, 0
    %v605 = vsel %vm377, %v600, 0
    %607 = vmatprep.subr.bf16.mxu0 0
    %608 = vmatpush1.bf16.msra.mxu0 0
    %609 = vmatprep.subr.bf16.mxu0 0
    %610 = vmatpush1.bf16.msra.mxu0 0
    %611 = vmatprep.subr.bf16.mxu0 0
    %612 = vmatpush1.bf16.msra.mxu0 0
    %613 = vmatprep.subr.bf16.mxu0 0
    %614 = vmatpush1.bf16.msra.mxu0 0
    %615 = vmatprep.subr.bf16.mxu0 0
    %616 = vmatpush1.bf16.msra.mxu0 0
    %617 = vmatprep.subr.bf16.mxu0 0
    %618 = vmatpush1.bf16.msra.mxu0 0
    %619 = vmatprep.subr.bf16.mxu0 0
    %620 = vmatpush1.bf16.msra.mxu0 0
    %621 = vmatprep.subr.bf16.mxu0 0
    %622 = vmatpush1.bf16.msra.mxu0 %v605
    %623 = vmatprep.subr.bf16.mxu0 0
    %624 = vmatpush2.bf16.msra.mxu0 0
    %625 = vmatprep.subr.bf16.mxu0 0
    %626 = vmatpush2.bf16.msra.mxu0 0
    %627 = vmatprep.subr.bf16.mxu0 0
    %628 = vmatpush2.bf16.msra.mxu0 0
    %629 = vmatprep.subr.bf16.mxu0 0
    %630 = vmatpush2.bf16.msra.mxu0 0
    %631 = vmatprep.subr.bf16.mxu0 0
    %632 = vmatpush2.bf16.msra.mxu0 0
    %633 = vmatprep.subr.bf16.mxu0 0
    %634 = vmatpush2.bf16.msra.mxu0 0
    %635 = vmatprep.subr.bf16.mxu0 0
    %636 = vmatpush2.bf16.msra.mxu0 0
    %637 = vmatprep.subr.bf16.mxu0 0
    %638 = vmatpush2.bf16.msra.mxu0 0
    %639 = vmatprep.mubr.bf16.mxu0 0
    %640 = vmatmul.mubr.bf16.gmra.mxu0 %v602
    %v641 = vpop.f32.mrf.mxu0
    %v642 = vadd.f32 0.0, %v641
    %v643 = vpop.f32.mrf.mxu0
    %v644 = vpop.f32.mrf.mxu0
    %v645 = vpop.f32.mrf.mxu0
    %646 = vdwg.mxu0
    %647 = vrot.lane.b32.xlu0 %v244, 56
    %v648 = vpop.permute.xlu0 %647
    %v650 = vsel %vm248, %v598, 0
    %v653 = vsel %vm377, %v648, 0
    %655 = vmatprep.subr.bf16.mxu0 0
    %656 = vmatpush1.bf16.msra.mxu0 0
    %657 = vmatprep.subr.bf16.mxu0 0
    %658 = vmatpush1.bf16.msra.mxu0 0
    %659 = vmatprep.subr.bf16.mxu0 0
    %660 = vmatpush1.bf16.msra.mxu0 0
    %661 = vmatprep.subr.bf16.mxu0 0
    %662 = vmatpush1.bf16.msra.mxu0 0
    %663 = vmatprep.subr.bf16.mxu0 0
    %664 = vmatpush1.bf16.msra.mxu0 0
    %665 = vmatprep.subr.bf16.mxu0 0
    %666 = vmatpush1.bf16.msra.mxu0 0
    %667 = vmatprep.subr.bf16.mxu0 0
    %668 = vmatpush1.bf16.msra.mxu0 0
    %669 = vmatprep.subr.bf16.mxu0 0
    %670 = vmatpush1.bf16.msra.mxu0 %v653
    %671 = vmatprep.subr.bf16.mxu0 0
    %672 = vmatpush2.bf16.msra.mxu0 0
    %673 = vmatprep.subr.bf16.mxu0 0
    %674 = vmatpush2.bf16.msra.mxu0 0
    %675 = vmatprep.subr.bf16.mxu0 0
    %676 = vmatpush2.bf16.msra.mxu0 0
    %677 = vmatprep.subr.bf16.mxu0 0
    %678 = vmatpush2.bf16.msra.mxu0 0
    %679 = vmatprep.subr.bf16.mxu0 0
    %680 = vmatpush2.bf16.msra.mxu0 0
    %681 = vmatprep.subr.bf16.mxu0 0
    %682 = vmatpush2.bf16.msra.mxu0 0
    %683 = vmatprep.subr.bf16.mxu0 0
    %684 = vmatpush2.bf16.msra.mxu0 0
    %685 = vmatprep.subr.bf16.mxu0 0
    %686 = vmatpush2.bf16.msra.mxu0 0
    %687 = vmatprep.mubr.bf16.mxu0 0
    %688 = vmatmul.mubr.bf16.gmra.mxu0 %v650
    %v689 = vpop.f32.mrf.mxu0
    %v690 = vadd.f32 0.0, %v689
    %v691 = vpop.f32.mrf.mxu0
    %v692 = vpop.f32.mrf.mxu0
    %v693 = vpop.f32.mrf.mxu0
    %694 = vdwg.mxu0
    %v695 = vpack.c.bf16 %v690, %v642
    %s696 = scalar_lea.vmem [#allocation2], 4
    %v697 = vld [vmem:[%s696] sm:$0xf]
    %v699 = vsel %vm248, %v695, 0
    %v702 = vsel %vm377, %v697, 0
    %704 = vmatprep.subr.bf16.mxu0 0
    %705 = vmatpush1.bf16.msra.mxu0 0
    %706 = vmatprep.subr.bf16.mxu0 0
    %707 = vmatpush1.bf16.msra.mxu0 0
    %708 = vmatprep.subr.bf16.mxu0 0
    %709 = vmatpush1.bf16.msra.mxu0 0
    %710 = vmatprep.subr.bf16.mxu0 0
    %711 = vmatpush1.bf16.msra.mxu0 0
    %712 = vmatprep.subr.bf16.mxu0 0
    %713 = vmatpush1.bf16.msra.mxu0 0
    %714 = vmatprep.subr.bf16.mxu0 0
    %715 = vmatpush1.bf16.msra.mxu0 0
    %716 = vmatprep.subr.bf16.mxu0 0
    %717 = vmatpush1.bf16.msra.mxu0 0
    %718 = vmatprep.subr.bf16.mxu0 0
    %719 = vmatpush1.bf16.msra.mxu0 %v702
    %720 = vmatprep.subr.bf16.mxu0 0
    %721 = vmatpush2.bf16.msra.mxu0 0
    %722 = vmatprep.subr.bf16.mxu0 0
    %723 = vmatpush2.bf16.msra.mxu0 0
    %724 = vmatprep.subr.bf16.mxu0 0
    %725 = vmatpush2.bf16.msra.mxu0 0
    %726 = vmatprep.subr.bf16.mxu0 0
    %727 = vmatpush2.bf16.msra.mxu0 0
    %728 = vmatprep.subr.bf16.mxu0 0
    %729 = vmatpush2.bf16.msra.mxu0 0
    %730 = vmatprep.subr.bf16.mxu0 0
    %731 = vmatpush2.bf16.msra.mxu0 0
    %732 = vmatprep.subr.bf16.mxu0 0
    %733 = vmatpush2.bf16.msra.mxu0 0
    %734 = vmatprep.subr.bf16.mxu0 0
    %735 = vmatpush2.bf16.msra.mxu0 0
    %736 = vmatprep.mubr.bf16.mxu0 0
    %737 = vmatmul.mubr.bf16.gmra.mxu0 %v699
    %v738 = vpop.f32.mrf.mxu0
    %v739 = vadd.f32 0.0, %v738
    %v740 = vpop.f32.mrf.mxu0
    %v741 = vpop.f32.mrf.mxu0
    %v742 = vadd.f32 0.0, %v741
    %v743 = vpop.f32.mrf.mxu0
    %744 = vdwg.mxu0
    %v746 = vsel %vm248, %v469, 0
    %v749 = vsel %vm377, %v470, 0
    %751 = vmatprep.subr.bf16.mxu0 0
    %752 = vmatpush1.bf16.msra.mxu0 0
    %753 = vmatprep.subr.bf16.mxu0 0
    %754 = vmatpush1.bf16.msra.mxu0 0
    %755 = vmatprep.subr.bf16.mxu0 0
    %756 = vmatpush1.bf16.msra.mxu0 0
    %757 = vmatprep.subr.bf16.mxu0 0
    %758 = vmatpush1.bf16.msra.mxu0 0
    %759 = vmatprep.subr.bf16.mxu0 0
    %760 = vmatpush1.bf16.msra.mxu0 0
    %761 = vmatprep.subr.bf16.mxu0 0
    %762 = vmatpush1.bf16.msra.mxu0 0
    %763 = vmatprep.subr.bf16.mxu0 0
    %764 = vmatpush1.bf16.msra.mxu0 0
    %765 = vmatprep.subr.bf16.mxu0 0
    %766 = vmatpush1.bf16.msra.mxu0 %v749
    %767 = vmatprep.subr.bf16.mxu0 0
    %768 = vmatpush2.bf16.msra.mxu0 0
    %769 = vmatprep.subr.bf16.mxu0 0
    %770 = vmatpush2.bf16.msra.mxu0 0
    %771 = vmatprep.subr.bf16.mxu0 0
    %772 = vmatpush2.bf16.msra.mxu0 0
    %773 = vmatprep.subr.bf16.mxu0 0
    %774 = vmatpush2.bf16.msra.mxu0 0
    %775 = vmatprep.subr.bf16.mxu0 0
    %776 = vmatpush2.bf16.msra.mxu0 0
    %777 = vmatprep.subr.bf16.mxu0 0
    %778 = vmatpush2.bf16.msra.mxu0 0
    %779 = vmatprep.subr.bf16.mxu0 0
    %780 = vmatpush2.bf16.msra.mxu0 0
    %781 = vmatprep.subr.bf16.mxu0 0
    %782 = vmatpush2.bf16.msra.mxu0 0
    %783 = vmatprep.mubr.bf16.mxu0 0
    %784 = vmatmul.mubr.bf16.gmra.mxu0 %v746
    %v785 = vpop.f32.mrf.mxu0
    %v786 = vadd.f32 %v739, %v785
    %v787 = vpop.f32.mrf.mxu0
    %v788 = vpop.f32.mrf.mxu0
    %v789 = vadd.f32 %v742, %v788
    %v790 = vpop.f32.mrf.mxu0
    %791 = vdwg.mxu0
    %792 = vrot.lane.b32.xlu0 %v243, 112
    %v793 = vpop.permute.xlu0 %792
    %794 = vrot.lane.b32.xlu0 %v243, 80
    %v795 = vpop.permute.xlu0 %794
    %v797 = vsel %vm248, %v793, 0
    %v800 = vsel %vm248, %v795, 0
    %802 = vmatprep.subr.bf16.mxu0 0
    %803 = vmatpush1.bf16.xpose.msra.mxu0 0
    %804 = vmatprep.subr.bf16.mxu0 0
    %805 = vmatpush1.bf16.xpose.msra.mxu0 0
    %806 = vmatprep.subr.bf16.mxu0 0
    %807 = vmatpush1.bf16.xpose.msra.mxu0 0
    %808 = vmatprep.subr.bf16.mxu0 0
    %809 = vmatpush1.bf16.xpose.msra.mxu0 0
    %810 = vmatprep.subr.bf16.mxu0 0
    %811 = vmatpush1.bf16.xpose.msra.mxu0 0
    %812 = vmatprep.subr.bf16.mxu0 0
    %813 = vmatpush1.bf16.xpose.msra.mxu0 0
    %814 = vmatprep.subr.bf16.mxu0 0
    %815 = vmatpush1.bf16.xpose.msra.mxu0 0
    %816 = vmatprep.subr.bf16.mxu0 0
    %817 = vmatpush1.bf16.xpose.msra.mxu0 %v800
    %818 = vmatprep.subr.bf16.mxu0 0
    %819 = vmatpush2.bf16.xpose.msra.mxu0 0
    %820 = vmatprep.subr.bf16.mxu0 0
    %821 = vmatpush2.bf16.xpose.msra.mxu0 0
    %822 = vmatprep.subr.bf16.mxu0 0
    %823 = vmatpush2.bf16.xpose.msra.mxu0 0
    %824 = vmatprep.subr.bf16.mxu0 0
    %825 = vmatpush2.bf16.xpose.msra.mxu0 0
    %826 = vmatprep.subr.bf16.mxu0 0
    %827 = vmatpush2.bf16.xpose.msra.mxu0 0
    %828 = vmatprep.subr.bf16.mxu0 0
    %829 = vmatpush2.bf16.xpose.msra.mxu0 0
    %830 = vmatprep.subr.bf16.mxu0 0
    %831 = vmatpush2.bf16.xpose.msra.mxu0 0
    %832 = vmatprep.subr.bf16.mxu0 0
    %833 = vmatpush2.bf16.xpose.msra.mxu0 0
    %834 = vmatprep.mubr.bf16.mxu0 0
    %835 = vmatmul.mubr.bf16.gmra.mxu0 %v797
    %v836 = vpop.f32.mrf.mxu0
    %v837 = vadd.f32 0.0, %v836
    %v838 = vpop.f32.mrf.mxu0
    %v839 = vpop.f32.mrf.mxu0
    %v840 = vpop.f32.mrf.mxu0
    %841 = vdwg.mxu0
    %842 = vrot.lane.b32.xlu0 %v244, 112
    %v843 = vpop.permute.xlu0 %842
    %844 = vrot.lane.b32.xlu0 %v244, 80
    %v845 = vpop.permute.xlu0 %844
    %v847 = vsel %vm248, %v843, 0
    %v850 = vsel %vm248, %v845, 0
    %852 = vmatprep.subr.bf16.mxu0 0
    %853 = vmatpush1.bf16.xpose.msra.mxu0 0
    %854 = vmatprep.subr.bf16.mxu0 0
    %855 = vmatpush1.bf16.xpose.msra.mxu0 0
    %856 = vmatprep.subr.bf16.mxu0 0
    %857 = vmatpush1.bf16.xpose.msra.mxu0 0
    %858 = vmatprep.subr.bf16.mxu0 0
    %859 = vmatpush1.bf16.xpose.msra.mxu0 0
    %860 = vmatprep.subr.bf16.mxu0 0
    %861 = vmatpush1.bf16.xpose.msra.mxu0 0
    %862 = vmatprep.subr.bf16.mxu0 0
    %863 = vmatpush1.bf16.xpose.msra.mxu0 0
    %864 = vmatprep.subr.bf16.mxu0 0
    %865 = vmatpush1.bf16.xpose.msra.mxu0 0
    %866 = vmatprep.subr.bf16.mxu0 0
    %867 = vmatpush1.bf16.xpose.msra.mxu0 %v850
    %868 = vmatprep.subr.bf16.mxu0 0
    %869 = vmatpush2.bf16.xpose.msra.mxu0 0
    %870 = vmatprep.subr.bf16.mxu0 0
    %871 = vmatpush2.bf16.xpose.msra.mxu0 0
    %872 = vmatprep.subr.bf16.mxu0 0
    %873 = vmatpush2.bf16.xpose.msra.mxu0 0
    %874 = vmatprep.subr.bf16.mxu0 0
    %875 = vmatpush2.bf16.xpose.msra.mxu0 0
    %876 = vmatprep.subr.bf16.mxu0 0
    %877 = vmatpush2.bf16.xpose.msra.mxu0 0
    %878 = vmatprep.subr.bf16.mxu0 0
    %879 = vmatpush2.bf16.xpose.msra.mxu0 0
    %880 = vmatprep.subr.bf16.mxu0 0
    %881 = vmatpush2.bf16.xpose.msra.mxu0 0
    %882 = vmatprep.subr.bf16.mxu0 0
    %883 = vmatpush2.bf16.xpose.msra.mxu0 0
    %884 = vmatprep.mubr.bf16.mxu0 0
    %885 = vmatmul.mubr.bf16.gmra.mxu0 %v847
    %v886 = vpop.f32.mrf.mxu0
    %v887 = vadd.f32 0.0, %v886
    %v888 = vpop.f32.mrf.mxu0
    %v889 = vpop.f32.mrf.mxu0
    %v890 = vpop.f32.mrf.mxu0
    %891 = vdwg.mxu0
    %v892 = vmul.f32 %v837, 0.35355338
    %v893 = vmul.f32 %v887, 0.35355338
    %v894 = vadd.f32 %v892, %v113
    %v895 = vadd.f32 %v893, %v114
    %v896 = vsel %vm248, %v894, -inf
    %897 = vmax.xlane.f32.xlu0 %v896
    %v898 = vpop.xlane.xlu0 %897
    %v899 = vsel %vm248, %v895, -inf
    %900 = vmax.xlane.f32.xlu0 %v899
    %v901 = vpop.xlane.xlu0 %900
    %v902 = vsub.f32 %v894, %v898
    %v903 = vsub.f32 %v895, %v901
    %v904 = vmul.f32 %v902, 1.442695
    %v905 = vpow.pop %v904
    %v906 = vmul.f32 %v903, 1.442695
    %v907 = vpow.pop %v906
    %v908 = vsel %vm248, %v905, 0.0
    %909 = vadd.xlane.f32.xlu0 %v908
    %v910 = vpop.xlane.xlu0 %909
    %v911 = vsel %vm248, %v907, 0.0
    %912 = vadd.xlane.f32.xlu0 %v911
    %v913 = vpop.xlane.xlu0 %912
    %v914 = vrcp.pop %v910
    %v915 = vrcp.pop %v913
    %v916 = vmul.f32 %v905, %v914
    %v917 = vmul.f32 %v907, %v915
    %v918 = vpack.c.bf16 %v916, %v916
    %v919 = vpack.c.bf16 %v917, %v917
    %920 = vrot.lane.b32.xlu0 %v243, 48
    %v921 = vpop.permute.xlu0 %920
    %v923 = vsel %vm248, %v918, 0
    %v926 = vsel %vm377, %v921, 0
    %928 = vmatprep.subr.bf16.mxu0 0
    %929 = vmatpush1.bf16.msra.mxu0 0
    %930 = vmatprep.subr.bf16.mxu0 0
    %931 = vmatpush1.bf16.msra.mxu0 0
    %932 = vmatprep.subr.bf16.mxu0 0
    %933 = vmatpush1.bf16.msra.mxu0 0
    %934 = vmatprep.subr.bf16.mxu0 0
    %935 = vmatpush1.bf16.msra.mxu0 0
    %936 = vmatprep.subr.bf16.mxu0 0
    %937 = vmatpush1.bf16.msra.mxu0 0
    %938 = vmatprep.subr.bf16.mxu0 0
    %939 = vmatpush1.bf16.msra.mxu0 0
    %940 = vmatprep.subr.bf16.mxu0 0
    %941 = vmatpush1.bf16.msra.mxu0 0
    %942 = vmatprep.subr.bf16.mxu0 0
    %943 = vmatpush1.bf16.msra.mxu0 %v926
    %944 = vmatprep.subr.bf16.mxu0 0
    %945 = vmatpush2.bf16.msra.mxu0 0
    %946 = vmatprep.subr.bf16.mxu0 0
    %947 = vmatpush2.bf16.msra.mxu0 0
    %948 = vmatprep.subr.bf16.mxu0 0
    %949 = vmatpush2.bf16.msra.mxu0 0
    %950 = vmatprep.subr.bf16.mxu0 0
    %951 = vmatpush2.bf16.msra.mxu0 0
    %952 = vmatprep.subr.bf16.mxu0 0
    %953 = vmatpush2.bf16.msra.mxu0 0
    %954 = vmatprep.subr.bf16.mxu0 0
    %955 = vmatpush2.bf16.msra.mxu0 0
    %956 = vmatprep.subr.bf16.mxu0 0
    %957 = vmatpush2.bf16.msra.mxu0 0
    %958 = vmatprep.subr.bf16.mxu0 0
    %959 = vmatpush2.bf16.msra.mxu0 0
    %960 = vmatprep.mubr.bf16.mxu0 0
    %961 = vmatmul.mubr.bf16.gmra.mxu0 %v923
    %v962 = vpop.f32.mrf.mxu0
    %v963 = vadd.f32 0.0, %v962
    %v964 = vpop.f32.mrf.mxu0
    %v965 = vpop.f32.mrf.mxu0
    %v966 = vpop.f32.mrf.mxu0
    %967 = vdwg.mxu0
    %968 = vrot.lane.b32.xlu0 %v244, 48
    %v969 = vpop.permute.xlu0 %968
    %v971 = vsel %vm248, %v919, 0
    %v974 = vsel %vm377, %v969, 0
    %976 = vmatprep.subr.bf16.mxu0 0
    %977 = vmatpush1.bf16.msra.mxu0 0
    %978 = vmatprep.subr.bf16.mxu0 0
    %979 = vmatpush1.bf16.msra.mxu0 0
    %980 = vmatprep.subr.bf16.mxu0 0
    %981 = vmatpush1.bf16.msra.mxu0 0
    %982 = vmatprep.subr.bf16.mxu0 0
    %983 = vmatpush1.bf16.msra.mxu0 0
    %984 = vmatprep.subr.bf16.mxu0 0
    %985 = vmatpush1.bf16.msra.mxu0 0
    %986 = vmatprep.subr.bf16.mxu0 0
    %987 = vmatpush1.bf16.msra.mxu0 0
    %988 = vmatprep.subr.bf16.mxu0 0
    %989 = vmatpush1.bf16.msra.mxu0 0
    %990 = vmatprep.subr.bf16.mxu0 0
    %991 = vmatpush1.bf16.msra.mxu0 %v974
    %992 = vmatprep.subr.bf16.mxu0 0
    %993 = vmatpush2.bf16.msra.mxu0 0
    %994 = vmatprep.subr.bf16.mxu0 0
    %995 = vmatpush2.bf16.msra.mxu0 0
    %996 = vmatprep.subr.bf16.mxu0 0
    %997 = vmatpush2.bf16.msra.mxu0 0
    %998 = vmatprep.subr.bf16.mxu0 0
    %999 = vmatpush2.bf16.msra.mxu0 0
    %1000 = vmatprep.subr.bf16.mxu0 0
    %1001 = vmatpush2.bf16.msra.mxu0 0
    %1002 = vmatprep.subr.bf16.mxu0 0
    %1003 = vmatpush2.bf16.msra.mxu0 0
    %1004 = vmatprep.subr.bf16.mxu0 0
    %1005 = vmatpush2.bf16.msra.mxu0 0
    %1006 = vmatprep.subr.bf16.mxu0 0
    %1007 = vmatpush2.bf16.msra.mxu0 0
    %1008 = vmatprep.mubr.bf16.mxu0 0
    %1009 = vmatmul.mubr.bf16.gmra.mxu0 %v971
    %v1010 = vpop.f32.mrf.mxu0
    %v1011 = vadd.f32 0.0, %v1010
    %v1012 = vpop.f32.mrf.mxu0
    %v1013 = vpop.f32.mrf.mxu0
    %v1014 = vpop.f32.mrf.mxu0
    %1015 = vdwg.mxu0
    %v1016 = vpack.c.bf16 %v1011, %v963
    %s1017 = scalar_lea.vmem [#allocation2], 8
    %v1018 = vld [vmem:[%s1017] sm:$0xf]
    %v1020 = vsel %vm248, %v1016, 0
    %v1023 = vsel %vm377, %v1018, 0
    %1025 = vmatprep.subr.bf16.mxu0 0
    %1026 = vmatpush1.bf16.msra.mxu0 0
    %1027 = vmatprep.subr.bf16.mxu0 0
    %1028 = vmatpush1.bf16.msra.mxu0 0
    %1029 = vmatprep.subr.bf16.mxu0 0
    %1030 = vmatpush1.bf16.msra.mxu0 0
    %1031 = vmatprep.subr.bf16.mxu0 0
    %1032 = vmatpush1.bf16.msra.mxu0 0
    %1033 = vmatprep.subr.bf16.mxu0 0
    %1034 = vmatpush1.bf16.msra.mxu0 0
    %1035 = vmatprep.subr.bf16.mxu0 0
    %1036 = vmatpush1.bf16.msra.mxu0 0
    %1037 = vmatprep.subr.bf16.mxu0 0
    %1038 = vmatpush1.bf16.msra.mxu0 0
    %1039 = vmatprep.subr.bf16.mxu0 0
    %1040 = vmatpush1.bf16.msra.mxu0 %v1023
    %1041 = vmatprep.subr.bf16.mxu0 0
    %1042 = vmatpush2.bf16.msra.mxu0 0
    %1043 = vmatprep.subr.bf16.mxu0 0
    %1044 = vmatpush2.bf16.msra.mxu0 0
    %1045 = vmatprep.subr.bf16.mxu0 0
    %1046 = vmatpush2.bf16.msra.mxu0 0
    %1047 = vmatprep.subr.bf16.mxu0 0
    %1048 = vmatpush2.bf16.msra.mxu0 0
    %1049 = vmatprep.subr.bf16.mxu0 0
    %1050 = vmatpush2.bf16.msra.mxu0 0
    %1051 = vmatprep.subr.bf16.mxu0 0
    %1052 = vmatpush2.bf16.msra.mxu0 0
    %1053 = vmatprep.subr.bf16.mxu0 0
    %1054 = vmatpush2.bf16.msra.mxu0 0
    %1055 = vmatprep.subr.bf16.mxu0 0
    %1056 = vmatpush2.bf16.msra.mxu0 0
    %1057 = vmatprep.mubr.bf16.mxu0 0
    %1058 = vmatmul.mubr.bf16.gmra.mxu0 %v1020
    %v1059 = vpop.f32.mrf.mxu0
    %v1060 = vadd.f32 0.0, %v1059
    %v1061 = vpop.f32.mrf.mxu0
    %v1062 = vpop.f32.mrf.mxu0
    %v1063 = vadd.f32 0.0, %v1062
    %v1064 = vpop.f32.mrf.mxu0
    %1065 = vdwg.mxu0
    %v1066 = vadd.f32 %v786, %v1060
    %v1067 = vadd.f32 %v789, %v1063
    %1068 = vrot.lane.b32.xlu0 %v243, 104
    %v1069 = vpop.permute.xlu0 %1068
    %1070 = vrot.lane.b32.xlu0 %v243, 72
    %v1071 = vpop.permute.xlu0 %1070
    %v1073 = vsel %vm248, %v1069, 0
    %v1076 = vsel %vm248, %v1071, 0
    %1078 = vmatprep.subr.bf16.mxu0 0
    %1079 = vmatpush1.bf16.xpose.msra.mxu0 0
    %1080 = vmatprep.subr.bf16.mxu0 0
    %1081 = vmatpush1.bf16.xpose.msra.mxu0 0
    %1082 = vmatprep.subr.bf16.mxu0 0
    %1083 = vmatpush1.bf16.xpose.msra.mxu0 0
    %1084 = vmatprep.subr.bf16.mxu0 0
    %1085 = vmatpush1.bf16.xpose.msra.mxu0 0
    %1086 = vmatprep.subr.bf16.mxu0 0
    %1087 = vmatpush1.bf16.xpose.msra.mxu0 0
    %1088 = vmatprep.subr.bf16.mxu0 0
    %1089 = vmatpush1.bf16.xpose.msra.mxu0 0
    %1090 = vmatprep.subr.bf16.mxu0 0
    %1091 = vmatpush1.bf16.xpose.msra.mxu0 0
    %1092 = vmatprep.subr.bf16.mxu0 0
    %1093 = vmatpush1.bf16.xpose.msra.mxu0 %v1076
    %1094 = vmatprep.subr.bf16.mxu0 0
    %1095 = vmatpush2.bf16.xpose.msra.mxu0 0
    %1096 = vmatprep.subr.bf16.mxu0 0
    %1097 = vmatpush2.bf16.xpose.msra.mxu0 0
    %1098 = vmatprep.subr.bf16.mxu0 0
    %1099 = vmatpush2.bf16.xpose.msra.mxu0 0
    %1100 = vmatprep.subr.bf16.mxu0 0
    %1101 = vmatpush2.bf16.xpose.msra.mxu0 0
    %1102 = vmatprep.subr.bf16.mxu0 0
    %1103 = vmatpush2.bf16.xpose.msra.mxu0 0
    %1104 = vmatprep.subr.bf16.mxu0 0
    %1105 = vmatpush2.bf16.xpose.msra.mxu0 0
    %1106 = vmatprep.subr.bf16.mxu0 0
    %1107 = vmatpush2.bf16.xpose.msra.mxu0 0
    %1108 = vmatprep.subr.bf16.mxu0 0
    %1109 = vmatpush2.bf16.xpose.msra.mxu0 0
    %1110 = vmatprep.mubr.bf16.mxu0 0
    %1111 = vmatmul.mubr.bf16.gmra.mxu0 %v1073
    %v1112 = vpop.f32.mrf.mxu0
    %v1113 = vadd.f32 0.0, %v1112
    %v1114 = vpop.f32.mrf.mxu0
    %v1115 = vpop.f32.mrf.mxu0
    %v1116 = vpop.f32.mrf.mxu0
    %1117 = vdwg.mxu0
    %1118 = vrot.lane.b32.xlu0 %v244, 104
    %v1119 = vpop.permute.xlu0 %1118
    %1120 = vrot.lane.b32.xlu0 %v244, 72
    %v1121 = vpop.permute.xlu0 %1120
    %v1123 = vsel %vm248, %v1119, 0
    %v1126 = vsel %vm248, %v1121, 0
    %1128 = vmatprep.subr.bf16.mxu0 0
    %1129 = vmatpush1.bf16.xpose.msra.mxu0 0
    %1130 = vmatprep.subr.bf16.mxu0 0
    %1131 = vmatpush1.bf16.xpose.msra.mxu0 0
    %1132 = vmatprep.subr.bf16.mxu0 0
    %1133 = vmatpush1.bf16.xpose.msra.mxu0 0
    %1134 = vmatprep.subr.bf16.mxu0 0
    %1135 = vmatpush1.bf16.xpose.msra.mxu0 0
    %1136 = vmatprep.subr.bf16.mxu0 0
    %1137 = vmatpush1.bf16.xpose.msra.mxu0 0
    %1138 = vmatprep.subr.bf16.mxu0 0
    %1139 = vmatpush1.bf16.xpose.msra.mxu0 0
    %1140 = vmatprep.subr.bf16.mxu0 0
    %1141 = vmatpush1.bf16.xpose.msra.mxu0 0
    %1142 = vmatprep.subr.bf16.mxu0 0
    %1143 = vmatpush1.bf16.xpose.msra.mxu0 %v1126
    %1144 = vmatprep.subr.bf16.mxu0 0
    %1145 = vmatpush2.bf16.xpose.msra.mxu0 0
    %1146 = vmatprep.subr.bf16.mxu0 0
    %1147 = vmatpush2.bf16.xpose.msra.mxu0 0
    %1148 = vmatprep.subr.bf16.mxu0 0
    %1149 = vmatpush2.bf16.xpose.msra.mxu0 0
    %1150 = vmatprep.subr.bf16.mxu0 0
    %1151 = vmatpush2.bf16.xpose.msra.mxu0 0
    %1152 = vmatprep.subr.bf16.mxu0 0
    %1153 = vmatpush2.bf16.xpose.msra.mxu0 0
    %1154 = vmatprep.subr.bf16.mxu0 0
    %1155 = vmatpush2.bf16.xpose.msra.mxu0 0
    %1156 = vmatprep.subr.bf16.mxu0 0
    %1157 = vmatpush2.bf16.xpose.msra.mxu0 0
    %1158 = vmatprep.subr.bf16.mxu0 0
    %1159 = vmatpush2.bf16.xpose.msra.mxu0 0
    %1160 = vmatprep.mubr.bf16.mxu0 0
    %1161 = vmatmul.mubr.bf16.gmra.mxu0 %v1123
    %v1162 = vpop.f32.mrf.mxu0
    %v1163 = vadd.f32 0.0, %v1162
    %v1164 = vpop.f32.mrf.mxu0
    %v1165 = vpop.f32.mrf.mxu0
    %v1166 = vpop.f32.mrf.mxu0
    %1167 = vdwg.mxu0
    %v1168 = vmul.f32 %v1113, 0.35355338
    %v1169 = vmul.f32 %v1163, 0.35355338
    %v1170 = vadd.f32 %v1168, %v113
    %v1171 = vadd.f32 %v1169, %v114
    %v1172 = vsel %vm248, %v1170, -inf
    %1173 = vmax.xlane.f32.xlu0 %v1172
    %v1174 = vpop.xlane.xlu0 %1173
    %v1175 = vsel %vm248, %v1171, -inf
    %1176 = vmax.xlane.f32.xlu0 %v1175
    %v1177 = vpop.xlane.xlu0 %1176
    %v1178 = vsub.f32 %v1170, %v1174
    %v1179 = vsub.f32 %v1171, %v1177
    %v1180 = vmul.f32 %v1178, 1.442695
    %v1181 = vpow.pop %v1180
    %v1182 = vmul.f32 %v1179, 1.442695
    %v1183 = vpow.pop %v1182
    %v1184 = vsel %vm248, %v1181, 0.0
    %1185 = vadd.xlane.f32.xlu0 %v1184
    %v1186 = vpop.xlane.xlu0 %1185
    %v1187 = vsel %vm248, %v1183, 0.0
    %1188 = vadd.xlane.f32.xlu0 %v1187
    %v1189 = vpop.xlane.xlu0 %1188
    %v1190 = vrcp.pop %v1186
    %v1191 = vrcp.pop %v1189
    %v1192 = vmul.f32 %v1181, %v1190
    %v1193 = vmul.f32 %v1183, %v1191
    %v1194 = vpack.c.bf16 %v1192, %v1192
    %v1195 = vpack.c.bf16 %v1193, %v1193
    %1196 = vrot.lane.b32.xlu0 %v243, 40
    %v1197 = vpop.permute.xlu0 %1196
    %v1199 = vsel %vm248, %v1194, 0
    %v1202 = vsel %vm377, %v1197, 0
    %1204 = vmatprep.subr.bf16.mxu0 0
    %1205 = vmatpush1.bf16.msra.mxu0 0
    %1206 = vmatprep.subr.bf16.mxu0 0
    %1207 = vmatpush1.bf16.msra.mxu0 0
    %1208 = vmatprep.subr.bf16.mxu0 0
    %1209 = vmatpush1.bf16.msra.mxu0 0
    %1210 = vmatprep.subr.bf16.mxu0 0
    %1211 = vmatpush1.bf16.msra.mxu0 0
    %1212 = vmatprep.subr.bf16.mxu0 0
    %1213 = vmatpush1.bf16.msra.mxu0 0
    %1214 = vmatprep.subr.bf16.mxu0 0
    %1215 = vmatpush1.bf16.msra.mxu0 0
    %1216 = vmatprep.subr.bf16.mxu0 0
    %1217 = vmatpush1.bf16.msra.mxu0 0
    %1218 = vmatprep.subr.bf16.mxu0 0
    %1219 = vmatpush1.bf16.msra.mxu0 %v1202
    %1220 = vmatprep.subr.bf16.mxu0 0
    %1221 = vmatpush2.bf16.msra.mxu0 0
    %1222 = vmatprep.subr.bf16.mxu0 0
    %1223 = vmatpush2.bf16.msra.mxu0 0
    %1224 = vmatprep.subr.bf16.mxu0 0
    %1225 = vmatpush2.bf16.msra.mxu0 0
    %1226 = vmatprep.subr.bf16.mxu0 0
    %1227 = vmatpush2.bf16.msra.mxu0 0
    %1228 = vmatprep.subr.bf16.mxu0 0
    %1229 = vmatpush2.bf16.msra.mxu0 0
    %1230 = vmatprep.subr.bf16.mxu0 0
    %1231 = vmatpush2.bf16.msra.mxu0 0
    %1232 = vmatprep.subr.bf16.mxu0 0
    %1233 = vmatpush2.bf16.msra.mxu0 0
    %1234 = vmatprep.subr.bf16.mxu0 0
    %1235 = vmatpush2.bf16.msra.mxu0 0
    %1236 = vmatprep.mubr.bf16.mxu0 0
    %1237 = vmatmul.mubr.bf16.gmra.mxu0 %v1199
    %v1238 = vpop.f32.mrf.mxu0
    %v1239 = vadd.f32 0.0, %v1238
    %v1240 = vpop.f32.mrf.mxu0
    %v1241 = vpop.f32.mrf.mxu0
    %v1242 = vpop.f32.mrf.mxu0
    %1243 = vdwg.mxu0
    %1244 = vrot.lane.b32.xlu0 %v244, 40
    %v1245 = vpop.permute.xlu0 %1244
    %v1247 = vsel %vm248, %v1195, 0
    %v1250 = vsel %vm377, %v1245, 0
    %1252 = vmatprep.subr.bf16.mxu0 0
    %1253 = vmatpush1.bf16.msra.mxu0 0
    %1254 = vmatprep.subr.bf16.mxu0 0
    %1255 = vmatpush1.bf16.msra.mxu0 0
    %1256 = vmatprep.subr.bf16.mxu0 0
    %1257 = vmatpush1.bf16.msra.mxu0 0
    %1258 = vmatprep.subr.bf16.mxu0 0
    %1259 = vmatpush1.bf16.msra.mxu0 0
    %1260 = vmatprep.subr.bf16.mxu0 0
    %1261 = vmatpush1.bf16.msra.mxu0 0
    %1262 = vmatprep.subr.bf16.mxu0 0
    %1263 = vmatpush1.bf16.msra.mxu0 0
    %1264 = vmatprep.subr.bf16.mxu0 0
    %1265 = vmatpush1.bf16.msra.mxu0 0
    %1266 = vmatprep.subr.bf16.mxu0 0
    %1267 = vmatpush1.bf16.msra.mxu0 %v1250
    %1268 = vmatprep.subr.bf16.mxu0 0
    %1269 = vmatpush2.bf16.msra.mxu0 0
    %1270 = vmatprep.subr.bf16.mxu0 0
    %1271 = vmatpush2.bf16.msra.mxu0 0
    %1272 = vmatprep.subr.bf16.mxu0 0
    %1273 = vmatpush2.bf16.msra.mxu0 0
    %1274 = vmatprep.subr.bf16.mxu0 0
    %1275 = vmatpush2.bf16.msra.mxu0 0
    %1276 = vmatprep.subr.bf16.mxu0 0
    %1277 = vmatpush2.bf16.msra.mxu0 0
    %1278 = vmatprep.subr.bf16.mxu0 0
    %1279 = vmatpush2.bf16.msra.mxu0 0
    %1280 = vmatprep.subr.bf16.mxu0 0
    %1281 = vmatpush2.bf16.msra.mxu0 0
    %1282 = vmatprep.subr.bf16.mxu0 0
    %1283 = vmatpush2.bf16.msra.mxu0 0
    %1284 = vmatprep.mubr.bf16.mxu0 0
    %1285 = vmatmul.mubr.bf16.gmra.mxu0 %v1247
    %v1286 = vpop.f32.mrf.mxu0
    %v1287 = vadd.f32 0.0, %v1286
    %v1288 = vpop.f32.mrf.mxu0
    %v1289 = vpop.f32.mrf.mxu0
    %v1290 = vpop.f32.mrf.mxu0
    %1291 = vdwg.mxu0
    %v1292 = vpack.c.bf16 %v1287, %v1239
    %s1293 = scalar_lea.vmem [#allocation2], 12
    %v1294 = vld [vmem:[%s1293] sm:$0xf]
    %v1296 = vsel %vm248, %v1292, 0
    %v1299 = vsel %vm377, %v1294, 0
    %1301 = vmatprep.subr.bf16.mxu0 0
    %1302 = vmatpush1.bf16.msra.mxu0 0
    %1303 = vmatprep.subr.bf16.mxu0 0
    %1304 = vmatpush1.bf16.msra.mxu0 0
    %1305 = vmatprep.subr.bf16.mxu0 0
    %1306 = vmatpush1.bf16.msra.mxu0 0
    %1307 = vmatprep.subr.bf16.mxu0 0
    %1308 = vmatpush1.bf16.msra.mxu0 0
    %1309 = vmatprep.subr.bf16.mxu0 0
    %1310 = vmatpush1.bf16.msra.mxu0 0
    %1311 = vmatprep.subr.bf16.mxu0 0
    %1312 = vmatpush1.bf16.msra.mxu0 0
    %1313 = vmatprep.subr.bf16.mxu0 0
    %1314 = vmatpush1.bf16.msra.mxu0 0
    %1315 = vmatprep.subr.bf16.mxu0 0
    %1316 = vmatpush1.bf16.msra.mxu0 %v1299
    %1317 = vmatprep.subr.bf16.mxu0 0
    %1318 = vmatpush2.bf16.msra.mxu0 0
    %1319 = vmatprep.subr.bf16.mxu0 0
    %1320 = vmatpush2.bf16.msra.mxu0 0
    %1321 = vmatprep.subr.bf16.mxu0 0
    %1322 = vmatpush2.bf16.msra.mxu0 0
    %1323 = vmatprep.subr.bf16.mxu0 0
    %1324 = vmatpush2.bf16.msra.mxu0 0
    %1325 = vmatprep.subr.bf16.mxu0 0
    %1326 = vmatpush2.bf16.msra.mxu0 0
    %1327 = vmatprep.subr.bf16.mxu0 0
    %1328 = vmatpush2.bf16.msra.mxu0 0
    %1329 = vmatprep.subr.bf16.mxu0 0
    %1330 = vmatpush2.bf16.msra.mxu0 0
    %1331 = vmatprep.subr.bf16.mxu0 0
    %1332 = vmatpush2.bf16.msra.mxu0 0
    %1333 = vmatprep.mubr.bf16.mxu0 0
    %1334 = vmatmul.mubr.bf16.gmra.mxu0 %v1296
    %v1335 = vpop.f32.mrf.mxu0
    %v1336 = vadd.f32 0.0, %v1335
    %v1337 = vpop.f32.mrf.mxu0
    %v1338 = vpop.f32.mrf.mxu0
    %v1339 = vadd.f32 0.0, %v1338
    %v1340 = vpop.f32.mrf.mxu0
    %1341 = vdwg.mxu0
    %v1342 = vadd.f32 %v1066, %v1336
    %v1343 = vadd.f32 %v1067, %v1339
    %v1344 = vld [vmem:[%s5] sm:$0x1]
    %v1346 = vlaneseq
    %v1347 = vshrl.u32 %v1346, 7
    %v1348 = vsub.s32 0, %v1347
    %v1349 = vrot.slane %v1344, %v1348
    %v1351 = vadd.f32 %v1342, %v1349
    %v1352 = vadd.f32 %v1343, %v1349
    %v1353 = vadd.f32 %v111, %v1351
    %v1354 = vadd.f32 %v112, %v1352
    %v1355 = vld [vmem:[%s12] sm:$0x1]
    %v1356 = vld [vmem:[%s13] sm:$0x1]
    %v1357 = vsel %vm117, %v1353, 0.0
    %1358 = vadd.xlane.f32.xlu0 %v1357
    %v1359 = vpop.xlane.xlu0 %1358
    %v1360 = vsel %vm117, %v1354, 0.0
    %1361 = vadd.xlane.f32.xlu0 %v1360
    %v1362 = vpop.xlane.xlu0 %1361
    %v1363 = vmul.f32 %v1359, %v124
    %v1364 = vmul.f32 %v1362, %v124
    %v1365 = vsub.f32 %v1353, %v1363
    %v1366 = vsub.f32 %v1354, %v1364
    %v1367 = vmul.f32 %v1365, %v1365
    %v1368 = vmul.f32 %v1366, %v1366
    %v1369 = vsel %vm117, %v1367, 0.0
    %1370 = vadd.xlane.f32.xlu0 %v1369
    %v1371 = vpop.xlane.xlu0 %1370
    %v1372 = vsel %vm117, %v1368, 0.0
    %1373 = vadd.xlane.f32.xlu0 %v1372
    %v1374 = vpop.xlane.xlu0 %1373
    %v1375 = vmul.f32 %v1371, 0.032258064
    %v1376 = vmul.f32 %v1374, 0.032258064
    %v1377 = vrsqrt.pop %v1375
    %v1378 = vmul.f32 %v1375, %v1377
    %vm1379 = vcmp.eq.f32.partialorder %v1375, inf
    %v1380 = vsel %vm1379, %v1375, %v1378
    %vm1381 = vcmp.eq.f32.partialorder %v1375, 0.0
    %v1382 = vand.u32 %v1375, 2147483648
    %v1383 = vsel %vm1381, %v1382, %v1380
    %v1384 = vrsqrt.pop %v1376
    %v1385 = vmul.f32 %v1376, %v1384
    %vm1386 = vcmp.eq.f32.partialorder %v1376, inf
    %v1387 = vsel %vm1386, %v1376, %v1385
    %vm1388 = vcmp.eq.f32.partialorder %v1376, 0.0
    %v1389 = vand.u32 %v1376, 2147483648
    %v1390 = vsel %vm1388, %v1389, %v1387
    %v1391 = vadd.f32 %v1383, 1e-06
    %v1392 = vadd.f32 %v1390, 1e-06
    %v1393 = vrcp.pop %v1391
    %v1394 = vrcp.pop %v1392
    %v1396 = vlaneseq
    %v1397 = vshrl.u32 %v1396, 7
    %v1398 = vsub.s32 0, %v1397
    %v1399 = vrot.slane %v1355, %v1398
    %v1401 = vmul.f32 %v1399, %v1365
    %v1402 = vmul.f32 %v1399, %v1366
    %v1403 = vmul.f32 %v1401, %v1393
    %v1404 = vmul.f32 %v1402, %v1394
    %v1406 = vlaneseq
    %v1407 = vshrl.u32 %v1406, 7
    %v1408 = vsub.s32 0, %v1407
    %v1409 = vrot.slane %v1356, %v1408
    %v1411 = vadd.f32 %v1403, %v1409
    %v1412 = vadd.f32 %v1404, %v1409
    %v1413 = vpack.c.bf16 %v1412, %v1411
    %v1414 = vld [vmem:[#allocation8] sm:$0xf]
    %v1415 = vld [vmem:[#allocation8 + $0x4] sm:$0xf]
    %v1416 = vld [vmem:[#allocation8 + $0x8] sm:$0xf]
    %v1417 = vld [vmem:[#allocation8 + $0xc] sm:$0xf]
    %v1418 = vld [vmem:[#allocation10] sm:$0x1]
    %v1420 = vlaneseq
    %v1421 = vshrl.u32 %v1420, 7
    %v1422 = vsub.s32 0, %v1421
    %v1423 = vrot.slane %v1418, %v1422
    %v1429 = vunpack.c.l.b16 %v1414
    %v1430 = vunpack.c.l.b16 %v1415
    %v1431 = vunpack.c.l.b16 %v1416
    %v1432 = vunpack.c.l.b16 %v1417
    %v1433 = vpack.c.b16 %v1430, %v1429
    %v1434 = vpack.c.b16 %v1432, %v1431
    %v1438 = vsel %vm117, %v1413, 0
    %1440 = vmatprep.subr.bf16.mxu0 0
    %1441 = vmatpush1.bf16.msra.mxu0 0
    %1442 = vmatprep.subr.bf16.mxu0 0
    %1443 = vmatpush1.bf16.msra.mxu0 0
    %1444 = vmatprep.subr.bf16.mxu0 0
    %1445 = vmatpush1.bf16.msra.mxu0 0
    %1446 = vmatprep.subr.bf16.mxu0 0
    %1447 = vmatpush1.bf16.msra.mxu0 0
    %1448 = vmatprep.subr.bf16.mxu0 0
    %1449 = vmatpush1.bf16.msra.mxu0 0
    %1450 = vmatprep.subr.bf16.mxu0 0
    %1451 = vmatpush1.bf16.msra.mxu0 0
    %1452 = vmatprep.subr.bf16.mxu0 0
    %1453 = vmatpush1.bf16.msra.mxu0 %v1434
    %1454 = vmatprep.subr.bf16.mxu0 0
    %1455 = vmatpush1.bf16.msra.mxu0 %v1433
    %1456 = vmatprep.subr.bf16.mxu0 0
    %1457 = vmatpush2.bf16.msra.mxu0 0
    %1458 = vmatprep.subr.bf16.mxu0 0
    %1459 = vmatpush2.bf16.msra.mxu0 0
    %1460 = vmatprep.subr.bf16.mxu0 0
    %1461 = vmatpush2.bf16.msra.mxu0 0
    %1462 = vmatprep.subr.bf16.mxu0 0
    %1463 = vmatpush2.bf16.msra.mxu0 0
    %1464 = vmatprep.subr.bf16.mxu0 0
    %1465 = vmatpush2.bf16.msra.mxu0 0
    %1466 = vmatprep.subr.bf16.mxu0 0
    %1467 = vmatpush2.bf16.msra.mxu0 0
    %1468 = vmatprep.subr.bf16.mxu0 0
    %1469 = vmatpush2.bf16.msra.mxu0 0
    %1470 = vmatprep.subr.bf16.mxu0 0
    %1471 = vmatpush2.bf16.msra.mxu0 0
    %1472 = vmatprep.mubr.bf16.mxu0 0
    %1473 = vmatmul.mubr.bf16.gmra.mxu0 %v1438
    %v1474 = vpop.f32.mrf.mxu0
    %v1475 = vadd.f32 %v1423, %v1474
    %v1476 = vpop.f32.mrf.mxu0
    %v1477 = vpop.f32.mrf.mxu0
    %v1478 = vadd.f32 %v1423, %v1477
    %v1479 = vpop.f32.mrf.mxu0
    %1480 = vdwg.mxu0
    %v1481 = vmax.f32 %v1475, 0.0
    %v1482 = vmax.f32 %v1478, 0.0
    %v1483 = vpack.c.bf16 %v1482, %v1481
    %v1484 = vld [vmem:[%s10] sm:$0xf]
    %v1485 = vld [vmem:[%s10 + $0x4] sm:$0xf]
    %v1486 = vld [vmem:[%s10 + $0x8] sm:$0xf]
    %v1487 = vld [vmem:[%s10 + $0xc] sm:$0xf]
    %v1488 = vld [vmem:[%s10 + $0x10] sm:$0xf]
    %v1489 = vld [vmem:[%s10 + $0x14] sm:$0xf]
    %v1490 = vld [vmem:[%s10 + $0x18] sm:$0xf]
    %v1491 = vld [vmem:[%s10 + $0x1c] sm:$0xf]
    %v1492 = vld [vmem:[%s11] sm:$0x1]
    %v1494 = vlaneseq
    %v1495 = vshrl.u32 %v1494, 7
    %v1496 = vsub.s32 0, %v1495
    %v1497 = vrot.slane %v1492, %v1496
    %v1507 = vunpack.c.l.b16 %v1484
    %v1508 = vunpack.c.l.b16 %v1485
    %v1509 = vunpack.c.l.b16 %v1486
    %v1510 = vunpack.c.l.b16 %v1487
    %v1511 = vunpack.c.l.b16 %v1488
    %v1512 = vunpack.c.l.b16 %v1489
    %v1513 = vunpack.c.l.b16 %v1490
    %v1514 = vunpack.c.l.b16 %v1491
    %v1515 = vpack.c.b16 %v1508, %v1507
    %v1516 = vpack.c.b16 %v1510, %v1509
    %v1517 = vpack.c.b16 %v1512, %v1511
    %v1518 = vpack.c.b16 %v1514, %v1513
    %vm1523 = vcmask 523264
    %v1525 = vsel %vm1523, %v1483, 0
    %1527 = vmatprep.subr.bf16.mxu0 0
    %1528 = vmatpush1.bf16.msra.mxu0 0
    %1529 = vmatprep.subr.bf16.mxu0 0
    %1530 = vmatpush1.bf16.msra.mxu0 0
    %1531 = vmatprep.subr.bf16.mxu0 0
    %1532 = vmatpush1.bf16.msra.mxu0 0
    %1533 = vmatprep.subr.bf16.mxu0 0
    %1534 = vmatpush1.bf16.msra.mxu0 0
    %1535 = vmatprep.subr.bf16.mxu0 0
    %1536 = vmatpush1.bf16.msra.mxu0 %v1518
    %1537 = vmatprep.subr.bf16.mxu0 0
    %1538 = vmatpush1.bf16.msra.mxu0 %v1517
    %1539 = vmatprep.subr.bf16.mxu0 0
    %1540 = vmatpush1.bf16.msra.mxu0 %v1516
    %1541 = vmatprep.subr.bf16.mxu0 0
    %1542 = vmatpush1.bf16.msra.mxu0 %v1515
    %1543 = vmatprep.subr.bf16.mxu0 0
    %1544 = vmatpush2.bf16.msra.mxu0 0
    %1545 = vmatprep.subr.bf16.mxu0 0
    %1546 = vmatpush2.bf16.msra.mxu0 0
    %1547 = vmatprep.subr.bf16.mxu0 0
    %1548 = vmatpush2.bf16.msra.mxu0 0
    %1549 = vmatprep.subr.bf16.mxu0 0
    %1550 = vmatpush2.bf16.msra.mxu0 0
    %1551 = vmatprep.subr.bf16.mxu0 0
    %1552 = vmatpush2.bf16.msra.mxu0 0
    %1553 = vmatprep.subr.bf16.mxu0 0
    %1554 = vmatpush2.bf16.msra.mxu0 0
    %1555 = vmatprep.subr.bf16.mxu0 0
    %1556 = vmatpush2.bf16.msra.mxu0 0
    %1557 = vmatprep.subr.bf16.mxu0 0
    %1558 = vmatpush2.bf16.msra.mxu0 0
    %1559 = vmatprep.mubr.bf16.mxu0 0
    %1560 = vmatmul.mubr.bf16.gmra.mxu0 %v1525
    %v1561 = vpop.f32.mrf.mxu0
    %v1562 = vadd.f32 %v1497, %v1561
    %v1563 = vpop.f32.mrf.mxu0
    %v1564 = vpop.f32.mrf.mxu0
    %v1565 = vadd.f32 %v1497, %v1564
    %v1566 = vpop.f32.mrf.mxu0
    %1567 = vdwg.mxu0
    %v1568 = vadd.f32 %v1353, %v1562
    %v1569 = vadd.f32 %v1354, %v1565
    %1570 = vst.msk [vmem:[#allocation11] sm:$0xff] %vm117, %v1568
    %1571 = vst.msk [vmem:[#allocation11 + $0x8] sm:$0xff] %vm117, %v1569
    // Predicated region
    $region78: #{tpu_custom_call.1} parent=1 // pred_check
      _
    $region79: #{tpu_custom_call.1} parent=1 // pred_check_branch
      %1573 = sbr.rel (0) target = $region81
    $region80: #{tpu_custom_call.1} parent=1 // pred_region
      %s1575 = ssub.s32 256, 256
      %1576 = vsyncadd [#allocation4], %s1575
      %s1577 = sshll.u32 [#allocation11], 4
      %s1578 = int_to_ptr.vmem [resolvable:$true] %s1577
      %1583 = dma.vmem_to_hbm [thread:$0]  %s1578, 256, %s14, [#allocation4], 128, 128, 8
    $region81: #{tpu_custom_call.1} parent=1 // pred_fallthru
      _
    // Predicated region
    $region82: #{tpu_custom_call.1} parent=1 // pred_check
      _
    $region83: #{tpu_custom_call.1} parent=1 // pred_check_branch
      %1585 = sbr.rel (0) target = $region85
    $region84: #{tpu_custom_call.1} parent=1 // pred_region
      %1586 = dma.done [#allocation4], 256
    $region85: #{tpu_custom_call.1} parent=1 // pred_fallthru
      _
    %1587 = vsyncpa [#allocation3], 1
    %1588 = vsyncpa [#allocation6], 1
    %1589 = vsyncpa [#allocation9], 1
    %1590 = vsyncpa [#allocation4], 1

</llo_original>
